<compile_context>
chip_gen: v7x
topology: tpu7x:2x2x1
jax: 0.10.0
libtpu: 0.0.40
codegen_flags: <defaults>
</compile_context>

<pallas_src>
import jax
import jax.numpy as jnp
from jax import lax
from jax.experimental import pallas as pl
from jax.experimental.pallas import tpu as pltpu

# ----------------------------- config ---------------------------------------
B = 2            # batch
S = 8            # sequence length
H = 32           # bert hidden size
NUM_HEADS = 2
HEAD_DIM = H // NUM_HEADS
NUM_LAYERS = 2
INTER = 64       # intermediate (FFN) size
VOCAB = 32       # vocab_size + marker_size + prompt_size (synthetic)
OUT = 32         # config.encoder_output_size
HEAD_ID = 1      # use_unused == 1 -> head marker id
TAIL_ID = 3      # use_unused == 1 -> tail marker id

MXU_DTYPE = jnp.bfloat16   # MXU operand dtype (f32 accumulation everywhere)

# per-layer small-vector slab: 8 rows x max(3H, INTER) cols
VEC_W = max(3 * H, INTER)
(R_BQKV, R_BO, R_LN1G, R_LN1B, R_BI, R_B2, R_LN2G, R_LN2B) = range(8)
N_VEC_ROWS = 8


# --------------------------- kernel helpers ----------------------------------
def _layernorm(x, g, b, eps=1e-12):
    mu = jnp.mean(x, axis=-1, keepdims=True)
    var = jnp.mean((x - mu) ** 2, axis=-1, keepdims=True)
    return (x - mu) * lax.rsqrt(var + eps) * g + b


def _gelu(x):
    # TODO(synk): HF BERT uses exact erf-GELU; tanh approximation used here
    # (EUP tanh path, numerically within ~1e-3).
    c = 0.7978845608028654  # sqrt(2/pi)
    return 0.5 * x * (1.0 + jnp.tanh(c * (x + 0.044715 * x * x * x)))


# ------------------------------ fused kernel ----------------------------------
def fused_bert_kernel(pos_ref,                                  # SMEM (B, 2) int32 (prefetch)
                      emb_ref, mask_ref, embln_ref,
                      wqkv_ref, wo_ref, wi_ref, w2_ref, vec_ref,
                      ltw_ref, ltb_ref,
                      o_ref,
                      x_sc):
    """Single grid step. All weights VMEM-resident; layers unrolled in-kernel."""
    # ---- embeddings LayerNorm
    x = _layernorm(emb_ref[...], embln_ref[0:1, :], embln_ref[1:2, :])   # (B*S, H) f32
    mask = mask_ref[...]                                                  # (B, 1, S) f32

    # ---- transformer layers (NUM_LAYERS is tiny -> full static unroll;
    #      weight refs indexed with static layer index, no streaming needed).
    for l in range(NUM_LAYERS):
        vecs = vec_ref[l]                                   # (8, VEC_W) f32
        bqkv = vecs[R_BQKV:R_BQKV + 1, :3 * H]
        bo   = vecs[R_BO:R_BO + 1, :H]
        ln1g = vecs[R_LN1G:R_LN1G + 1, :H]
        ln1b = vecs[R_LN1B:R_LN1B + 1, :H]
        bi   = vecs[R_BI:R_BI + 1, :INTER]
        b2   = vecs[R_B2:R_B2 + 1, :H]
        ln2g = vecs[R_LN2G:R_LN2G + 1, :H]
        ln2b = vecs[R_LN2B:R_LN2B + 1, :H]

        # Fused Q|K|V projection: one (B*S, H) @ (H, 3H) matmul
        # (columns head-blocked: per head [Q|K|V]; 1/sqrt(hd) folded into Wq/bq).
        qkv = jnp.dot(x.astype(MXU_DTYPE), wqkv_ref[l],
                      preferred_element_type=jnp.float32) + bqkv          # (B*S, 3H)
        qkv3 = qkv.reshape(B, S, 3 * H)

        # Per-head attention with batch-leading 3-D einsums (flash-ref pattern).
        ctx_heads = []
        for h in range(NUM_HEADS):
            off = h * 3 * HEAD_DIM
            q = qkv3[:, :, off:off + HEAD_DIM]                            # (B, S, HD)
            k = qkv3[:, :, off + HEAD_DIM:off + 2 * HEAD_DIM]
            v = qkv3[:, :, off + 2 * HEAD_DIM:off + 3 * HEAD_DIM]
            s = jnp.einsum('bqd,bkd->bqk', q.astype(MXU_DTYPE), k.astype(MXU_DTYPE),
                           preferred_element_type=jnp.float32) + mask     # (B, S, S)
            s = s - jnp.max(s, axis=-1, keepdims=True)
            p = jnp.exp(s)
            p = p * pl.reciprocal(jnp.sum(p, axis=-1, keepdims=True), approx=True)
            ctx_heads.append(jnp.einsum('bqk,bkd->bqd', p.astype(MXU_DTYPE),
                                        v.astype(MXU_DTYPE),
                                        preferred_element_type=jnp.float32))
        ctx = jnp.concatenate(ctx_heads, axis=-1).reshape(B * S, H)

        # Output projection: one (B*S, H) @ (H, H) contraction over (head, head_dim).
        attn = jnp.dot(ctx.astype(MXU_DTYPE), wo_ref[l],
                       preferred_element_type=jnp.float32) + bo
        h1 = _layernorm(x + attn, ln1g, ln1b)                             # (B*S, H)

        # Feed-forward + residual + LayerNorm.
        inter = _gelu(jnp.dot(h1.astype(MXU_DTYPE), wi_ref[l],
                              preferred_element_type=jnp.float32) + bi)
        ffn = jnp.dot(inter.astype(MXU_DTYPE), w2_ref[l],
                      preferred_element_type=jnp.float32) + b2
        x = _layernorm(h1 + ffn, ln2g, ln2b)

    # ---- entity-marker gather + linear_transform.
    x_sc[...] = x                                 # dynamic-index gather needs a ref
    head_rows = [x_sc[pl.ds(b * S + pos_ref[b, 0], 1), :] for b in range(B)]
    tail_rows = [x_sc[pl.ds(b * S + pos_ref[b, 1], 1), :] for b in range(B)]
    hfeat = jnp.concatenate(head_rows, axis=0)    # (B, H)
    tfeat = jnp.concatenate(tail_rows, axis=0)    # (B, H)
    # [h_head ; h_tail] @ lt_w == h_head @ lt_w[:H] + h_tail @ lt_w[H:]
    o_ref[...] = (jnp.dot(hfeat.astype(MXU_DTYPE), ltw_ref[:H, :],
                          preferred_element_type=jnp.float32)
                  + jnp.dot(tfeat.astype(MXU_DTYPE), ltw_ref[H:, :],
                            preferred_element_type=jnp.float32)
                  + ltb_ref[...])                 # (B, OUT)


# ------------------------------ wrapper --------------------------------------
def bert_encoder_forward(packed, input_ids, attention_mask):
    # TODO(synk): vocab-gather (word_emb[input_ids]) has no clean tiny-Pallas
    # equivalent; done in plain JAX like the original host-side lookup.
    emb = (packed['word_emb'][input_ids]
           + packed['pos_emb'][None, :S, :]
           + packed['type_emb'][0][None, None, :]).reshape(B * S, H)

    # Additive attention mask, computed once.
    add_mask = ((1.0 - attention_mask.astype(jnp.float32)) * (-1e9)).reshape(B, 1, S)

    # Entity-marker positions (np.argwhere(...)[0][0] equivalent).
    # NOTE: returns 0 silently if a marker is absent (original would raise).
    head_pos = jnp.argmax(input_ids == HEAD_ID, axis=1).astype(jnp.int32)
    tail_pos = jnp.argmax(input_ids == TAIL_ID, axis=1).astype(jnp.int32)
    pos = jnp.stack([head_pos, tail_pos], axis=1)                 # (B, 2)

    st = packed['stacked']

    grid_spec = pltpu.PrefetchScalarGridSpec(
        num_scalar_prefetch=1,
        grid=(1,),
        in_specs=[
            pl.BlockSpec((B * S, H), lambda i, p: (0, 0)),                        # emb
            pl.BlockSpec((B, 1, S), lambda i, p: (0, 0, 0)),                      # add_mask
            pl.BlockSpec((2, H), lambda i, p: (0, 0)),                            # emb LN [g;b]
            pl.BlockSpec((NUM_LAYERS, H, 3 * H), lambda i, p: (0, 0, 0)),         # wqkv (resident)
            pl.BlockSpec((NUM_LAYERS, H, H), lambda i, p: (0, 0, 0)),             # wo
            pl.BlockSpec((NUM_LAYERS, H, INTER), lambda i, p: (0, 0, 0)),         # wi
            pl.BlockSpec((NUM_LAYERS, INTER, H), lambda i, p: (0, 0, 0)),         # w2
            pl.BlockSpec((NUM_LAYERS, N_VEC_ROWS, VEC_W), lambda i, p: (0, 0, 0)),  # bias/LN slab
            pl.BlockSpec((2 * H, OUT), lambda i, p: (0, 0)),                      # lt_w
            pl.BlockSpec((1, OUT), lambda i, p: (0, 0)),                          # lt_b
        ],
        out_specs=pl.BlockSpec((B, OUT), lambda i, p: (0, 0)),
        scratch_shapes=[pltpu.VMEM((B * S, H), jnp.float32)],
    )

    out = pl.pallas_call(
        fused_bert_kernel,
        out_shape=jax.ShapeDtypeStruct((B, OUT), jnp.float32),
        grid_spec=grid_spec,
        compiler_params=pltpu.CompilerParams(dimension_semantics=("arbitrary",)),
    )(pos, emb, add_mask, packed['emb_ln'],
      st['wqkv'], st['wo'], st['wi'], st['w2'], st['vec'],
      packed['lt_w'], packed['lt_b'])

    return out


# ------------------------- deterministic params -------------------------------
def init_params(key):
    """Standard (torch-Linear-like, pre-transposed to (in, out)) parameters."""
    def nrm(k, shape):
        return jax.random.normal(k, shape, jnp.float32) * 0.02

    keys = iter(jax.random.split(key, 8 + NUM_LAYERS * 8))
    params = {
        'word_emb': nrm(next(keys), (VOCAB, H)),
        'pos_emb':  nrm(next(keys), (S, H)),
        'type_emb': nrm(next(keys), (2, H)),
        'emb_ln_g': jnp.ones((1, H), jnp.float32),
        'emb_ln_b': jnp.zeros((1, H), jnp.float32),
        # linear_transform: in = hidden*2 (entity_marker), out = output_size
        'lt_w': nrm(next(keys), (2 * H, OUT)),
        'lt_b': jnp.zeros((1, OUT), jnp.float32),
        'layers': [],
    }
    for _ in range(NUM_LAYERS):
        params['layers'].append(dict(
            wq=nrm(next(keys), (H, H)), bq=jnp.zeros((1, H), jnp.float32),
            wk=nrm(next(keys), (H, H)), bk=jnp.zeros((1, H), jnp.float32),
            wv=nrm(next(keys), (H, H)), bv=jnp.zeros((1, H), jnp.float32),
            wo=nrm(next(keys), (H, H)), bo=jnp.zeros((1, H), jnp.float32),
            ln1_g=jnp.ones((1, H), jnp.float32), ln1_b=jnp.zeros((1, H), jnp.float32),
            wi=nrm(next(keys), (H, INTER)), bi=jnp.zeros((1, INTER), jnp.float32),
            w2=nrm(next(keys), (INTER, H)), b2=jnp.zeros((1, H), jnp.float32),
            ln2_g=jnp.ones((1, H), jnp.float32), ln2_b=jnp.zeros((1, H), jnp.float32),
        ))
    return params


def pack_params(params):
    """One-time re-layout: stack per-layer weights along a layer axis, pack
    Q|K|V head-blocked into one (H, 3H) matrix, fold the 1/sqrt(hd) softmax
    scale into Wq/bq, pack all per-layer small vectors into one slab, and cast
    matmul weights to bf16 (biases / LN params stay f32)."""
    scale = 1.0 / (HEAD_DIM ** 0.5)

    def pad_row(v):
        return jnp.pad(v, ((0, 0), (0, VEC_W - v.shape[1])))

    wqkv_l, wo_l, wi_l, w2_l, vec_l = [], [], [], [], []
    for L in params['layers']:
        w_blocks, b_blocks = [], []
        for h in range(NUM_HEADS):
            sl = slice(h * HEAD_DIM, (h + 1) * HEAD_DIM)
            w_blocks.append(jnp.concatenate(
                [L['wq'][:, sl] * scale, L['wk'][:, sl], L['wv'][:, sl]], axis=1))
            b_blocks.append(jnp.concatenate(
                [L['bq'][:, sl] * scale, L['bk'][:, sl], L['bv'][:, sl]], axis=1))
        wqkv_l.append(jnp.concatenate(w_blocks, axis=1))         # (H, 3H) head-blocked
        bqkv = jnp.concatenate(b_blocks, axis=1)                 # (1, 3H)
        wo_l.append(L['wo'])
        wi_l.append(L['wi'])
        w2_l.append(L['w2'])
        vec_l.append(jnp.concatenate(
            [pad_row(bqkv), pad_row(L['bo']),
             pad_row(L['ln1_g']), pad_row(L['ln1_b']),
             pad_row(L['bi']), pad_row(L['b2']),
             pad_row(L['ln2_g']), pad_row(L['ln2_b'])], axis=0))  # (8, VEC_W)

    st = dict(
        wqkv=jnp.stack(wqkv_l).astype(MXU_DTYPE),   # (L, H, 3H)
        wo=jnp.stack(wo_l).astype(MXU_DTYPE),       # (L, H, H)
        wi=jnp.stack(wi_l).astype(MXU_DTYPE),       # (L, H, INTER)
        w2=jnp.stack(w2_l).astype(MXU_DTYPE),       # (L, INTER, H)
        vec=jnp.stack(vec_l),                       # (L, 8, VEC_W) f32
    )
    return dict(
        word_emb=params['word_emb'], pos_emb=params['pos_emb'],
        type_emb=params['type_emb'],
        emb_ln=jnp.concatenate([params['emb_ln_g'], params['emb_ln_b']], axis=0),  # (2, H)
        lt_w=params['lt_w'].astype(MXU_DTYPE), lt_b=params['lt_b'],
        stacked=st)


# -------------------------------- main ----------------------------------------
if __name__ == "__main__":
    key = jax.random.PRNGKey(0)
    k_params, k_ids = jax.random.split(key)

    params = init_params(k_params)
    packed = pack_params(params)

    # deterministic token ids with entity markers inserted per row
    input_ids = jax.random.randint(k_ids, (B, S), 4, VOCAB, dtype=jnp.int32)
    input_ids = input_ids.at[0, 2].set(HEAD_ID).at[0, 5].set(TAIL_ID)
    input_ids = input_ids.at[1, 1].set(HEAD_ID).at[1, 6].set(TAIL_ID)

    attention_mask = jnp.ones((B, S), jnp.float32).at[:, -1].set(0.0)

    fwd = jax.jit(bert_encoder_forward)
    out = fwd(packed, input_ids, attention_mask)
    jax.block_until_ready(out)

    assert out.shape == (B, OUT) and out.dtype == jnp.float32
    assert bool(jnp.all(jnp.isfinite(out)))
    print("KERNEL_OK")
</pallas_src>

<mosaic_0001>
module attributes {stable_mosaic.version = 11 : i64} {
  func.func @fused_bert_kernel(%arg0: i32, %arg1: memref<2x2xi32, #tpu.memory_space<smem>>, %arg2: memref<16x32xf32, #tpu.memory_space<vmem>>, %arg3: memref<2x1x8xf32, #tpu.memory_space<vmem>>, %arg4: memref<2x32xf32, #tpu.memory_space<vmem>>, %arg5: memref<2x32x96xbf16, #tpu.memory_space<vmem>>, %arg6: memref<2x32x32xbf16, #tpu.memory_space<vmem>>, %arg7: memref<2x32x64xbf16, #tpu.memory_space<vmem>>, %arg8: memref<2x64x32xbf16, #tpu.memory_space<vmem>>, %arg9: memref<2x8x96xf32, #tpu.memory_space<vmem>>, %arg10: memref<64x32xbf16, #tpu.memory_space<vmem>>, %arg11: memref<1x32xf32, #tpu.memory_space<vmem>>, %arg12: memref<2x32xf32, #tpu.memory_space<vmem>>, %arg13: memref<16x32xf32, #tpu.memory_space<vmem>>) attributes {dimension_semantics = [#tpu.dimension_semantics<arbitrary>], iteration_bounds = array<i64: 1>, scalar_prefetch = 1 : i64, scratch_operands = 1 : i64, tpu.core_type = #tpu.core_type<tc>, window_params = [{pipeline_mode = #tpu.pipeline_mode<synchronous>, transform_indices = @transform_0, window_bounds = array<i64: 16, 32>}, {pipeline_mode = #tpu.pipeline_mode<synchronous>, transform_indices = @transform_1, window_bounds = array<i64: 2, 1, 8>}, {pipeline_mode = #tpu.pipeline_mode<synchronous>, transform_indices = @transform_2, window_bounds = array<i64: 2, 32>}, {pipeline_mode = #tpu.pipeline_mode<synchronous>, transform_indices = @transform_3, window_bounds = array<i64: 2, 32, 96>}, {pipeline_mode = #tpu.pipeline_mode<synchronous>, transform_indices = @transform_4, window_bounds = array<i64: 2, 32, 32>}, {pipeline_mode = #tpu.pipeline_mode<synchronous>, transform_indices = @transform_5, window_bounds = array<i64: 2, 32, 64>}, {pipeline_mode = #tpu.pipeline_mode<synchronous>, transform_indices = @transform_6, window_bounds = array<i64: 2, 64, 32>}, {pipeline_mode = #tpu.pipeline_mode<synchronous>, transform_indices = @transform_7, window_bounds = array<i64: 2, 8, 96>}, {pipeline_mode = #tpu.pipeline_mode<synchronous>, transform_indices = @transform_8, window_bounds = array<i64: 64, 32>}, {pipeline_mode = #tpu.pipeline_mode<synchronous>, transform_indices = @transform_9, window_bounds = array<i64: 1, 32>}, {pipeline_mode = #tpu.pipeline_mode<synchronous>, transform_indices = @transform_10, window_bounds = array<i64: 2, 32>}]} {
    %c0 = arith.constant 0 : index
    %c0_0 = arith.constant 0 : index
    %0 = vector.load %arg2[%c0, %c0_0] : memref<16x32xf32, #tpu.memory_space<vmem>>, vector<16x32xf32>
    %c0_1 = arith.constant 0 : index
    %c0_2 = arith.constant 0 : index
    %1 = vector.load %arg4[%c0_1, %c0_2] : memref<2x32xf32, #tpu.memory_space<vmem>>, vector<1x32xf32>
    %c1 = arith.constant 1 : index
    %c0_3 = arith.constant 0 : index
    %2 = vector.load %arg4[%c1, %c0_3] : memref<2x32xf32, #tpu.memory_space<vmem>>, vector<1x32xf32>
    %cst = arith.constant dense<0.000000e+00> : vector<16xf32>
    %3 = vector.multi_reduction <add>, %0, %cst [1] : vector<16x32xf32> to vector<16xf32>
    %4 = vector.shape_cast %3 : vector<16xf32> to vector<16x1xf32>
    %cst_4 = arith.constant 3.200000e+01 : f32
    %5 = vector.broadcast %cst_4 : f32 to vector<16x1xf32>
    %6 = arith.divf %4, %5 : vector<16x1xf32>
    %7 = vector.broadcast %6 : vector<16x1xf32> to vector<16x32xf32>
    %8 = arith.subf %0, %7 : vector<16x32xf32>
    %9 = arith.mulf %8, %8 : vector<16x32xf32>
    %cst_5 = arith.constant dense<0.000000e+00> : vector<16xf32>
    %10 = vector.multi_reduction <add>, %9, %cst_5 [1] : vector<16x32xf32> to vector<16xf32>
    %11 = vector.shape_cast %10 : vector<16xf32> to vector<16x1xf32>
    %cst_6 = arith.constant 3.200000e+01 : f32
    %12 = vector.broadcast %cst_6 : f32 to vector<16x1xf32>
    %13 = arith.divf %11, %12 : vector<16x1xf32>
    %14 = vector.broadcast %6 : vector<16x1xf32> to vector<16x32xf32>
    %15 = arith.subf %0, %14 : vector<16x32xf32>
    %cst_7 = arith.constant 9.99999996E-13 : f32
    %16 = vector.broadcast %cst_7 : f32 to vector<16x1xf32>
    %17 = arith.addf %13, %16 : vector<16x1xf32>
    %18 = math.rsqrt %17 : vector<16x1xf32>
    %19 = vector.broadcast %18 : vector<16x1xf32> to vector<16x32xf32>
    %20 = arith.mulf %15, %19 : vector<16x32xf32>
    %21 = vector.broadcast %1 : vector<1x32xf32> to vector<16x32xf32>
    %22 = arith.mulf %20, %21 : vector<16x32xf32>
    %23 = vector.broadcast %2 : vector<1x32xf32> to vector<16x32xf32>
    %24 = arith.addf %22, %23 : vector<16x32xf32>
    %c0_8 = arith.constant 0 : index
    %c0_9 = arith.constant 0 : index
    %c0_10 = arith.constant 0 : index
    %25 = vector.load %arg3[%c0_8, %c0_9, %c0_10] : memref<2x1x8xf32, #tpu.memory_space<vmem>>, vector<2x1x8xf32>
    %c0_11 = arith.constant 0 : index
    %c0_12 = arith.constant 0 : index
    %c0_13 = arith.constant 0 : index
    %26 = vector.load %arg9[%c0_11, %c0_12, %c0_13] : memref<2x8x96xf32, #tpu.memory_space<vmem>>, vector<1x8x96xf32>
    %27 = vector.shape_cast %26 : vector<1x8x96xf32> to vector<8x96xf32>
    %28 = vector.extract_strided_slice %27 {offsets = [0, 0], sizes = [1, 96], strides = [1, 1]} : vector<8x96xf32> to vector<1x96xf32>
    %29 = vector.extract_strided_slice %27 {offsets = [1, 0], sizes = [1, 32], strides = [1, 1]} : vector<8x96xf32> to vector<1x32xf32>
    %30 = vector.extract_strided_slice %27 {offsets = [2, 0], sizes = [1, 32], strides = [1, 1]} : vector<8x96xf32> to vector<1x32xf32>
    %31 = vector.extract_strided_slice %27 {offsets = [3, 0], sizes = [1, 32], strides = [1, 1]} : vector<8x96xf32> to vector<1x32xf32>
    %32 = vector.extract_strided_slice %27 {offsets = [4, 0], sizes = [1, 64], strides = [1, 1]} : vector<8x96xf32> to vector<1x64xf32>
    %33 = vector.extract_strided_slice %27 {offsets = [5, 0], sizes = [1, 32], strides = [1, 1]} : vector<8x96xf32> to vector<1x32xf32>
    %34 = vector.extract_strided_slice %27 {offsets = [6, 0], sizes = [1, 32], strides = [1, 1]} : vector<8x96xf32> to vector<1x32xf32>
    %35 = vector.extract_strided_slice %27 {offsets = [7, 0], sizes = [1, 32], strides = [1, 1]} : vector<8x96xf32> to vector<1x32xf32>
    %36 = arith.truncf %24 : vector<16x32xf32> to vector<16x32xbf16>
    %c0_14 = arith.constant 0 : index
    %c0_15 = arith.constant 0 : index
    %c0_16 = arith.constant 0 : index
    %37 = vector.load %arg5[%c0_14, %c0_15, %c0_16] : memref<2x32x96xbf16, #tpu.memory_space<vmem>>, vector<1x32x96xbf16>
    %38 = vector.shape_cast %37 : vector<1x32x96xbf16> to vector<32x96xbf16>
    %cst_17 = arith.constant dense<0.000000e+00> : vector<16x96xf32>
    %39 = tpu.matmul %36, %38, %cst_17 {dimension_numbers = #tpu.dot_dimension_numbers<[1], [0], [0], [1], [0, 0, 1, 1], [], []>} : vector<16x32xbf16>, vector<32x96xbf16>, vector<16x96xf32> -> vector<16x96xf32>
    %40 = vector.broadcast %28 : vector<1x96xf32> to vector<16x96xf32>
    %41 = arith.addf %39, %40 : vector<16x96xf32>
    %42 = vector.shape_cast %41 : vector<16x96xf32> to vector<2x8x96xf32>
    %43 = vector.extract_strided_slice %42 {offsets = [0, 0, 0], sizes = [2, 8, 16], strides = [1, 1, 1]} : vector<2x8x96xf32> to vector<2x8x16xf32>
    %44 = vector.extract_strided_slice %42 {offsets = [0, 0, 16], sizes = [2, 8, 16], strides = [1, 1, 1]} : vector<2x8x96xf32> to vector<2x8x16xf32>
    %45 = vector.extract_strided_slice %42 {offsets = [0, 0, 32], sizes = [2, 8, 16], strides = [1, 1, 1]} : vector<2x8x96xf32> to vector<2x8x16xf32>
    %46 = arith.truncf %43 : vector<2x8x16xf32> to vector<2x8x16xbf16>
    %47 = arith.truncf %44 : vector<2x8x16xf32> to vector<2x8x16xbf16>
    "tpu.trace_start"() <{level = 10 : i32, message = "bqd,bkd->bqk"}> : () -> ()
    %cst_18 = arith.constant dense<0.000000e+00> : vector<2x8x8xf32>
    %48 = tpu.matmul %46, %47, %cst_18 {dimension_numbers = #tpu.dot_dimension_numbers<[2], [2], [1], [1], [0, 0, 0, 1, 1, 1], [0], [0]>} : vector<2x8x16xbf16>, vector<2x8x16xbf16>, vector<2x8x8xf32> -> vector<2x8x8xf32>
    "tpu.trace_stop"() : () -> ()
    %49 = vector.broadcast %25 : vector<2x1x8xf32> to vector<2x8x8xf32>
    %50 = arith.addf %48, %49 : vector<2x8x8xf32>
    %cst_19 = arith.constant dense<0xFF800000> : vector<2x8xf32>
    %51 = vector.multi_reduction <maximumf>, %50, %cst_19 [2] : vector<2x8x8xf32> to vector<2x8xf32>
    %52 = vector.shape_cast %51 : vector<2x8xf32> to vector<2x8x1xf32>
    %53 = vector.broadcast %52 : vector<2x8x1xf32> to vector<2x8x8xf32>
    %54 = arith.subf %50, %53 : vector<2x8x8xf32>
    %55 = math.exp %54 : vector<2x8x8xf32>
    %cst_20 = arith.constant dense<0.000000e+00> : vector<2x8xf32>
    %56 = vector.multi_reduction <add>, %55, %cst_20 [2] : vector<2x8x8xf32> to vector<2x8xf32>
    %57 = vector.shape_cast %56 : vector<2x8xf32> to vector<2x8x1xf32>
    %58 = tpu.reciprocal %57 {approx = true} : vector<2x8x1xf32> -> vector<2x8x1xf32>
    %59 = vector.broadcast %58 : vector<2x8x1xf32> to vector<2x8x8xf32>
    %60 = arith.mulf %55, %59 : vector<2x8x8xf32>
    %61 = arith.truncf %60 : vector<2x8x8xf32> to vector<2x8x8xbf16>
    %62 = arith.truncf %45 : vector<2x8x16xf32> to vector<2x8x16xbf16>
    "tpu.trace_start"() <{level = 10 : i32, message = "bqk,bkd->bqd"}> : () -> ()
    %cst_21 = arith.constant dense<0.000000e+00> : vector<2x8x16xf32>
    %63 = tpu.matmul %61, %62, %cst_21 {dimension_numbers = #tpu.dot_dimension_numbers<[2], [1], [1], [2], [0, 0, 0, 1, 1, 2], [0], [0]>} : vector<2x8x8xbf16>, vector<2x8x16xbf16>, vector<2x8x16xf32> -> vector<2x8x16xf32>
    "tpu.trace_stop"() : () -> ()
    %64 = vector.extract_strided_slice %42 {offsets = [0, 0, 48], sizes = [2, 8, 16], strides = [1, 1, 1]} : vector<2x8x96xf32> to vector<2x8x16xf32>
    %65 = vector.extract_strided_slice %42 {offsets = [0, 0, 64], sizes = [2, 8, 16], strides = [1, 1, 1]} : vector<2x8x96xf32> to vector<2x8x16xf32>
    %66 = vector.extract_strided_slice %42 {offsets = [0, 0, 80], sizes = [2, 8, 16], strides = [1, 1, 1]} : vector<2x8x96xf32> to vector<2x8x16xf32>
    %67 = arith.truncf %64 : vector<2x8x16xf32> to vector<2x8x16xbf16>
    %68 = arith.truncf %65 : vector<2x8x16xf32> to vector<2x8x16xbf16>
    "tpu.trace_start"() <{level = 10 : i32, message = "bqd,bkd->bqk"}> : () -> ()
    %cst_22 = arith.constant dense<0.000000e+00> : vector<2x8x8xf32>
    %69 = tpu.matmul %67, %68, %cst_22 {dimension_numbers = #tpu.dot_dimension_numbers<[2], [2], [1], [1], [0, 0, 0, 1, 1, 1], [0], [0]>} : vector<2x8x16xbf16>, vector<2x8x16xbf16>, vector<2x8x8xf32> -> vector<2x8x8xf32>
    "tpu.trace_stop"() : () -> ()
    %70 = vector.broadcast %25 : vector<2x1x8xf32> to vector<2x8x8xf32>
    %71 = arith.addf %69, %70 : vector<2x8x8xf32>
    %cst_23 = arith.constant dense<0xFF800000> : vector<2x8xf32>
    %72 = vector.multi_reduction <maximumf>, %71, %cst_23 [2] : vector<2x8x8xf32> to vector<2x8xf32>
    %73 = vector.shape_cast %72 : vector<2x8xf32> to vector<2x8x1xf32>
    %74 = vector.broadcast %73 : vector<2x8x1xf32> to vector<2x8x8xf32>
    %75 = arith.subf %71, %74 : vector<2x8x8xf32>
    %76 = math.exp %75 : vector<2x8x8xf32>
    %cst_24 = arith.constant dense<0.000000e+00> : vector<2x8xf32>
    %77 = vector.multi_reduction <add>, %76, %cst_24 [2] : vector<2x8x8xf32> to vector<2x8xf32>
    %78 = vector.shape_cast %77 : vector<2x8xf32> to vector<2x8x1xf32>
    %79 = tpu.reciprocal %78 {approx = true} : vector<2x8x1xf32> -> vector<2x8x1xf32>
    %80 = vector.broadcast %79 : vector<2x8x1xf32> to vector<2x8x8xf32>
    %81 = arith.mulf %76, %80 : vector<2x8x8xf32>
    %82 = arith.truncf %81 : vector<2x8x8xf32> to vector<2x8x8xbf16>
    %83 = arith.truncf %66 : vector<2x8x16xf32> to vector<2x8x16xbf16>
    "tpu.trace_start"() <{level = 10 : i32, message = "bqk,bkd->bqd"}> : () -> ()
    %cst_25 = arith.constant dense<0.000000e+00> : vector<2x8x16xf32>
    %84 = tpu.matmul %82, %83, %cst_25 {dimension_numbers = #tpu.dot_dimension_numbers<[2], [1], [1], [2], [0, 0, 0, 1, 1, 2], [0], [0]>} : vector<2x8x8xbf16>, vector<2x8x16xbf16>, vector<2x8x16xf32> -> vector<2x8x16xf32>
    "tpu.trace_stop"() : () -> ()
    %85 = tpu.concatenate %63, %84 in 2 : vector<2x8x16xf32>, vector<2x8x16xf32> -> vector<2x8x32xf32>
    %86 = vector.shape_cast %85 : vector<2x8x32xf32> to vector<16x32xf32>
    %87 = arith.truncf %86 : vector<16x32xf32> to vector<16x32xbf16>
    %c0_26 = arith.constant 0 : index
    %c0_27 = arith.constant 0 : index
    %c0_28 = arith.constant 0 : index
    %88 = vector.load %arg6[%c0_26, %c0_27, %c0_28] : memref<2x32x32xbf16, #tpu.memory_space<vmem>>, vector<1x32x32xbf16>
    %89 = vector.shape_cast %88 : vector<1x32x32xbf16> to vector<32x32xbf16>
    %cst_29 = arith.constant dense<0.000000e+00> : vector<16x32xf32>
    %90 = tpu.matmul %87, %89, %cst_29 {dimension_numbers = #tpu.dot_dimension_numbers<[1], [0], [0], [1], [0, 0, 1, 1], [], []>} : vector<16x32xbf16>, vector<32x32xbf16>, vector<16x32xf32> -> vector<16x32xf32>
    %91 = vector.broadcast %29 : vector<1x32xf32> to vector<16x32xf32>
    %92 = arith.addf %90, %91 : vector<16x32xf32>
    %93 = arith.addf %24, %92 : vector<16x32xf32>
    %cst_30 = arith.constant dense<0.000000e+00> : vector<16xf32>
    %94 = vector.multi_reduction <add>, %93, %cst_30 [1] : vector<16x32xf32> to vector<16xf32>
    %95 = vector.shape_cast %94 : vector<16xf32> to vector<16x1xf32>
    %cst_31 = arith.constant 3.200000e+01 : f32
    %96 = vector.broadcast %cst_31 : f32 to vector<16x1xf32>
    %97 = arith.divf %95, %96 : vector<16x1xf32>
    %98 = vector.broadcast %97 : vector<16x1xf32> to vector<16x32xf32>
    %99 = arith.subf %93, %98 : vector<16x32xf32>
    %100 = arith.mulf %99, %99 : vector<16x32xf32>
    %cst_32 = arith.constant dense<0.000000e+00> : vector<16xf32>
    %101 = vector.multi_reduction <add>, %100, %cst_32 [1] : vector<16x32xf32> to vector<16xf32>
    %102 = vector.shape_cast %101 : vector<16xf32> to vector<16x1xf32>
    %cst_33 = arith.constant 3.200000e+01 : f32
    %103 = vector.broadcast %cst_33 : f32 to vector<16x1xf32>
    %104 = arith.divf %102, %103 : vector<16x1xf32>
    %105 = vector.broadcast %97 : vector<16x1xf32> to vector<16x32xf32>
    %106 = arith.subf %93, %105 : vector<16x32xf32>
    %cst_34 = arith.constant 9.99999996E-13 : f32
    %107 = vector.broadcast %cst_34 : f32 to vector<16x1xf32>
    %108 = arith.addf %104, %107 : vector<16x1xf32>
    %109 = math.rsqrt %108 : vector<16x1xf32>
    %110 = vector.broadcast %109 : vector<16x1xf32> to vector<16x32xf32>
    %111 = arith.mulf %106, %110 : vector<16x32xf32>
    %112 = vector.broadcast %30 : vector<1x32xf32> to vector<16x32xf32>
    %113 = arith.mulf %111, %112 : vector<16x32xf32>
    %114 = vector.broadcast %31 : vector<1x32xf32> to vector<16x32xf32>
    %115 = arith.addf %113, %114 : vector<16x32xf32>
    %116 = arith.truncf %115 : vector<16x32xf32> to vector<16x32xbf16>
    %c0_35 = arith.constant 0 : index
    %c0_36 = arith.constant 0 : index
    %c0_37 = arith.constant 0 : index
    %117 = vector.load %arg7[%c0_35, %c0_36, %c0_37] : memref<2x32x64xbf16, #tpu.memory_space<vmem>>, vector<1x32x64xbf16>
    %118 = vector.shape_cast %117 : vector<1x32x64xbf16> to vector<32x64xbf16>
    %cst_38 = arith.constant dense<0.000000e+00> : vector<16x64xf32>
    %119 = tpu.matmul %116, %118, %cst_38 {dimension_numbers = #tpu.dot_dimension_numbers<[1], [0], [0], [1], [0, 0, 1, 1], [], []>} : vector<16x32xbf16>, vector<32x64xbf16>, vector<16x64xf32> -> vector<16x64xf32>
    %120 = vector.broadcast %32 : vector<1x64xf32> to vector<16x64xf32>
    %121 = arith.addf %119, %120 : vector<16x64xf32>
    %cst_39 = arith.constant 5.000000e-01 : f32
    %122 = vector.broadcast %cst_39 : f32 to vector<16x64xf32>
    %123 = arith.mulf %122, %121 : vector<16x64xf32>
    %cst_40 = arith.constant 4.471500e-02 : f32
    %124 = vector.broadcast %cst_40 : f32 to vector<16x64xf32>
    %125 = arith.mulf %124, %121 : vector<16x64xf32>
    %126 = arith.mulf %125, %121 : vector<16x64xf32>
    %127 = arith.mulf %126, %121 : vector<16x64xf32>
    %128 = arith.addf %121, %127 : vector<16x64xf32>
    %cst_41 = arith.constant 0.797884583 : f32
    %129 = vector.broadcast %cst_41 : f32 to vector<16x64xf32>
    %130 = arith.mulf %129, %128 : vector<16x64xf32>
    %131 = math.tanh %130 : vector<16x64xf32>
    %cst_42 = arith.constant 1.000000e+00 : f32
    %132 = vector.broadcast %cst_42 : f32 to vector<16x64xf32>
    %133 = arith.addf %132, %131 : vector<16x64xf32>
    %134 = arith.mulf %123, %133 : vector<16x64xf32>
    %135 = arith.truncf %134 : vector<16x64xf32> to vector<16x64xbf16>
    %c0_43 = arith.constant 0 : index
    %c0_44 = arith.constant 0 : index
    %c0_45 = arith.constant 0 : index
    %136 = vector.load %arg8[%c0_43, %c0_44, %c0_45] : memref<2x64x32xbf16, #tpu.memory_space<vmem>>, vector<1x64x32xbf16>
    %137 = vector.shape_cast %136 : vector<1x64x32xbf16> to vector<64x32xbf16>
    %cst_46 = arith.constant dense<0.000000e+00> : vector<16x32xf32>
    %138 = tpu.matmul %135, %137, %cst_46 {dimension_numbers = #tpu.dot_dimension_numbers<[1], [0], [0], [1], [0, 0, 1, 1], [], []>} : vector<16x64xbf16>, vector<64x32xbf16>, vector<16x32xf32> -> vector<16x32xf32>
    %139 = vector.broadcast %33 : vector<1x32xf32> to vector<16x32xf32>
    %140 = arith.addf %138, %139 : vector<16x32xf32>
    %141 = arith.addf %115, %140 : vector<16x32xf32>
    %cst_47 = arith.constant dense<0.000000e+00> : vector<16xf32>
    %142 = vector.multi_reduction <add>, %141, %cst_47 [1] : vector<16x32xf32> to vector<16xf32>
    %143 = vector.shape_cast %142 : vector<16xf32> to vector<16x1xf32>
    %cst_48 = arith.constant 3.200000e+01 : f32
    %144 = vector.broadcast %cst_48 : f32 to vector<16x1xf32>
    %145 = arith.divf %143, %144 : vector<16x1xf32>
    %146 = vector.broadcast %145 : vector<16x1xf32> to vector<16x32xf32>
    %147 = arith.subf %141, %146 : vector<16x32xf32>
    %148 = arith.mulf %147, %147 : vector<16x32xf32>
    %cst_49 = arith.constant dense<0.000000e+00> : vector<16xf32>
    %149 = vector.multi_reduction <add>, %148, %cst_49 [1] : vector<16x32xf32> to vector<16xf32>
    %150 = vector.shape_cast %149 : vector<16xf32> to vector<16x1xf32>
    %cst_50 = arith.constant 3.200000e+01 : f32
    %151 = vector.broadcast %cst_50 : f32 to vector<16x1xf32>
    %152 = arith.divf %150, %151 : vector<16x1xf32>
    %153 = vector.broadcast %145 : vector<16x1xf32> to vector<16x32xf32>
    %154 = arith.subf %141, %153 : vector<16x32xf32>
    %cst_51 = arith.constant 9.99999996E-13 : f32
    %155 = vector.broadcast %cst_51 : f32 to vector<16x1xf32>
    %156 = arith.addf %152, %155 : vector<16x1xf32>
    %157 = math.rsqrt %156 : vector<16x1xf32>
    %158 = vector.broadcast %157 : vector<16x1xf32> to vector<16x32xf32>
    %159 = arith.mulf %154, %158 : vector<16x32xf32>
    %160 = vector.broadcast %34 : vector<1x32xf32> to vector<16x32xf32>
    %161 = arith.mulf %159, %160 : vector<16x32xf32>
    %162 = vector.broadcast %35 : vector<1x32xf32> to vector<16x32xf32>
    %163 = arith.addf %161, %162 : vector<16x32xf32>
    %c1_52 = arith.constant 1 : index
    %c0_53 = arith.constant 0 : index
    %c0_54 = arith.constant 0 : index
    %164 = vector.load %arg9[%c1_52, %c0_53, %c0_54] : memref<2x8x96xf32, #tpu.memory_space<vmem>>, vector<1x8x96xf32>
    %165 = vector.shape_cast %164 : vector<1x8x96xf32> to vector<8x96xf32>
    %166 = vector.extract_strided_slice %165 {offsets = [0, 0], sizes = [1, 96], strides = [1, 1]} : vector<8x96xf32> to vector<1x96xf32>
    %167 = vector.extract_strided_slice %165 {offsets = [1, 0], sizes = [1, 32], strides = [1, 1]} : vector<8x96xf32> to vector<1x32xf32>
    %168 = vector.extract_strided_slice %165 {offsets = [2, 0], sizes = [1, 32], strides = [1, 1]} : vector<8x96xf32> to vector<1x32xf32>
    %169 = vector.extract_strided_slice %165 {offsets = [3, 0], sizes = [1, 32], strides = [1, 1]} : vector<8x96xf32> to vector<1x32xf32>
    %170 = vector.extract_strided_slice %165 {offsets = [4, 0], sizes = [1, 64], strides = [1, 1]} : vector<8x96xf32> to vector<1x64xf32>
    %171 = vector.extract_strided_slice %165 {offsets = [5, 0], sizes = [1, 32], strides = [1, 1]} : vector<8x96xf32> to vector<1x32xf32>
    %172 = vector.extract_strided_slice %165 {offsets = [6, 0], sizes = [1, 32], strides = [1, 1]} : vector<8x96xf32> to vector<1x32xf32>
    %173 = vector.extract_strided_slice %165 {offsets = [7, 0], sizes = [1, 32], strides = [1, 1]} : vector<8x96xf32> to vector<1x32xf32>
    %174 = arith.truncf %163 : vector<16x32xf32> to vector<16x32xbf16>
    %c1_55 = arith.constant 1 : index
    %c0_56 = arith.constant 0 : index
    %c0_57 = arith.constant 0 : index
    %175 = vector.load %arg5[%c1_55, %c0_56, %c0_57] : memref<2x32x96xbf16, #tpu.memory_space<vmem>>, vector<1x32x96xbf16>
    %176 = vector.shape_cast %175 : vector<1x32x96xbf16> to vector<32x96xbf16>
    %cst_58 = arith.constant dense<0.000000e+00> : vector<16x96xf32>
    %177 = tpu.matmul %174, %176, %cst_58 {dimension_numbers = #tpu.dot_dimension_numbers<[1], [0], [0], [1], [0, 0, 1, 1], [], []>} : vector<16x32xbf16>, vector<32x96xbf16>, vector<16x96xf32> -> vector<16x96xf32>
    %178 = vector.broadcast %166 : vector<1x96xf32> to vector<16x96xf32>
    %179 = arith.addf %177, %178 : vector<16x96xf32>
    %180 = vector.shape_cast %179 : vector<16x96xf32> to vector<2x8x96xf32>
    %181 = vector.extract_strided_slice %180 {offsets = [0, 0, 0], sizes = [2, 8, 16], strides = [1, 1, 1]} : vector<2x8x96xf32> to vector<2x8x16xf32>
    %182 = vector.extract_strided_slice %180 {offsets = [0, 0, 16], sizes = [2, 8, 16], strides = [1, 1, 1]} : vector<2x8x96xf32> to vector<2x8x16xf32>
    %183 = vector.extract_strided_slice %180 {offsets = [0, 0, 32], sizes = [2, 8, 16], strides = [1, 1, 1]} : vector<2x8x96xf32> to vector<2x8x16xf32>
    %184 = arith.truncf %181 : vector<2x8x16xf32> to vector<2x8x16xbf16>
    %185 = arith.truncf %182 : vector<2x8x16xf32> to vector<2x8x16xbf16>
    "tpu.trace_start"() <{level = 10 : i32, message = "bqd,bkd->bqk"}> : () -> ()
    %cst_59 = arith.constant dense<0.000000e+00> : vector<2x8x8xf32>
    %186 = tpu.matmul %184, %185, %cst_59 {dimension_numbers = #tpu.dot_dimension_numbers<[2], [2], [1], [1], [0, 0, 0, 1, 1, 1], [0], [0]>} : vector<2x8x16xbf16>, vector<2x8x16xbf16>, vector<2x8x8xf32> -> vector<2x8x8xf32>
    "tpu.trace_stop"() : () -> ()
    %187 = vector.broadcast %25 : vector<2x1x8xf32> to vector<2x8x8xf32>
    %188 = arith.addf %186, %187 : vector<2x8x8xf32>
    %cst_60 = arith.constant dense<0xFF800000> : vector<2x8xf32>
    %189 = vector.multi_reduction <maximumf>, %188, %cst_60 [2] : vector<2x8x8xf32> to vector<2x8xf32>
    %190 = vector.shape_cast %189 : vector<2x8xf32> to vector<2x8x1xf32>
    %191 = vector.broadcast %190 : vector<2x8x1xf32> to vector<2x8x8xf32>
    %192 = arith.subf %188, %191 : vector<2x8x8xf32>
    %193 = math.exp %192 : vector<2x8x8xf32>
    %cst_61 = arith.constant dense<0.000000e+00> : vector<2x8xf32>
    %194 = vector.multi_reduction <add>, %193, %cst_61 [2] : vector<2x8x8xf32> to vector<2x8xf32>
    %195 = vector.shape_cast %194 : vector<2x8xf32> to vector<2x8x1xf32>
    %196 = tpu.reciprocal %195 {approx = true} : vector<2x8x1xf32> -> vector<2x8x1xf32>
    %197 = vector.broadcast %196 : vector<2x8x1xf32> to vector<2x8x8xf32>
    %198 = arith.mulf %193, %197 : vector<2x8x8xf32>
    %199 = arith.truncf %198 : vector<2x8x8xf32> to vector<2x8x8xbf16>
    %200 = arith.truncf %183 : vector<2x8x16xf32> to vector<2x8x16xbf16>
    "tpu.trace_start"() <{level = 10 : i32, message = "bqk,bkd->bqd"}> : () -> ()
    %cst_62 = arith.constant dense<0.000000e+00> : vector<2x8x16xf32>
    %201 = tpu.matmul %199, %200, %cst_62 {dimension_numbers = #tpu.dot_dimension_numbers<[2], [1], [1], [2], [0, 0, 0, 1, 1, 2], [0], [0]>} : vector<2x8x8xbf16>, vector<2x8x16xbf16>, vector<2x8x16xf32> -> vector<2x8x16xf32>
    "tpu.trace_stop"() : () -> ()
    %202 = vector.extract_strided_slice %180 {offsets = [0, 0, 48], sizes = [2, 8, 16], strides = [1, 1, 1]} : vector<2x8x96xf32> to vector<2x8x16xf32>
    %203 = vector.extract_strided_slice %180 {offsets = [0, 0, 64], sizes = [2, 8, 16], strides = [1, 1, 1]} : vector<2x8x96xf32> to vector<2x8x16xf32>
    %204 = vector.extract_strided_slice %180 {offsets = [0, 0, 80], sizes = [2, 8, 16], strides = [1, 1, 1]} : vector<2x8x96xf32> to vector<2x8x16xf32>
    %205 = arith.truncf %202 : vector<2x8x16xf32> to vector<2x8x16xbf16>
    %206 = arith.truncf %203 : vector<2x8x16xf32> to vector<2x8x16xbf16>
    "tpu.trace_start"() <{level = 10 : i32, message = "bqd,bkd->bqk"}> : () -> ()
    %cst_63 = arith.constant dense<0.000000e+00> : vector<2x8x8xf32>
    %207 = tpu.matmul %205, %206, %cst_63 {dimension_numbers = #tpu.dot_dimension_numbers<[2], [2], [1], [1], [0, 0, 0, 1, 1, 1], [0], [0]>} : vector<2x8x16xbf16>, vector<2x8x16xbf16>, vector<2x8x8xf32> -> vector<2x8x8xf32>
    "tpu.trace_stop"() : () -> ()
    %208 = vector.broadcast %25 : vector<2x1x8xf32> to vector<2x8x8xf32>
    %209 = arith.addf %207, %208 : vector<2x8x8xf32>
    %cst_64 = arith.constant dense<0xFF800000> : vector<2x8xf32>
    %210 = vector.multi_reduction <maximumf>, %209, %cst_64 [2] : vector<2x8x8xf32> to vector<2x8xf32>
    %211 = vector.shape_cast %210 : vector<2x8xf32> to vector<2x8x1xf32>
    %212 = vector.broadcast %211 : vector<2x8x1xf32> to vector<2x8x8xf32>
    %213 = arith.subf %209, %212 : vector<2x8x8xf32>
    %214 = math.exp %213 : vector<2x8x8xf32>
    %cst_65 = arith.constant dense<0.000000e+00> : vector<2x8xf32>
    %215 = vector.multi_reduction <add>, %214, %cst_65 [2] : vector<2x8x8xf32> to vector<2x8xf32>
    %216 = vector.shape_cast %215 : vector<2x8xf32> to vector<2x8x1xf32>
    %217 = tpu.reciprocal %216 {approx = true} : vector<2x8x1xf32> -> vector<2x8x1xf32>
    %218 = vector.broadcast %217 : vector<2x8x1xf32> to vector<2x8x8xf32>
    %219 = arith.mulf %214, %218 : vector<2x8x8xf32>
    %220 = arith.truncf %219 : vector<2x8x8xf32> to vector<2x8x8xbf16>
    %221 = arith.truncf %204 : vector<2x8x16xf32> to vector<2x8x16xbf16>
    "tpu.trace_start"() <{level = 10 : i32, message = "bqk,bkd->bqd"}> : () -> ()
    %cst_66 = arith.constant dense<0.000000e+00> : vector<2x8x16xf32>
    %222 = tpu.matmul %220, %221, %cst_66 {dimension_numbers = #tpu.dot_dimension_numbers<[2], [1], [1], [2], [0, 0, 0, 1, 1, 2], [0], [0]>} : vector<2x8x8xbf16>, vector<2x8x16xbf16>, vector<2x8x16xf32> -> vector<2x8x16xf32>
    "tpu.trace_stop"() : () -> ()
    %223 = tpu.concatenate %201, %222 in 2 : vector<2x8x16xf32>, vector<2x8x16xf32> -> vector<2x8x32xf32>
    %224 = vector.shape_cast %223 : vector<2x8x32xf32> to vector<16x32xf32>
    %225 = arith.truncf %224 : vector<16x32xf32> to vector<16x32xbf16>
    %c1_67 = arith.constant 1 : index
    %c0_68 = arith.constant 0 : index
    %c0_69 = arith.constant 0 : index
    %226 = vector.load %arg6[%c1_67, %c0_68, %c0_69] : memref<2x32x32xbf16, #tpu.memory_space<vmem>>, vector<1x32x32xbf16>
    %227 = vector.shape_cast %226 : vector<1x32x32xbf16> to vector<32x32xbf16>
    %cst_70 = arith.constant dense<0.000000e+00> : vector<16x32xf32>
    %228 = tpu.matmul %225, %227, %cst_70 {dimension_numbers = #tpu.dot_dimension_numbers<[1], [0], [0], [1], [0, 0, 1, 1], [], []>} : vector<16x32xbf16>, vector<32x32xbf16>, vector<16x32xf32> -> vector<16x32xf32>
    %229 = vector.broadcast %167 : vector<1x32xf32> to vector<16x32xf32>
    %230 = arith.addf %228, %229 : vector<16x32xf32>
    %231 = arith.addf %163, %230 : vector<16x32xf32>
    %cst_71 = arith.constant dense<0.000000e+00> : vector<16xf32>
    %232 = vector.multi_reduction <add>, %231, %cst_71 [1] : vector<16x32xf32> to vector<16xf32>
    %233 = vector.shape_cast %232 : vector<16xf32> to vector<16x1xf32>
    %cst_72 = arith.constant 3.200000e+01 : f32
    %234 = vector.broadcast %cst_72 : f32 to vector<16x1xf32>
    %235 = arith.divf %233, %234 : vector<16x1xf32>
    %236 = vector.broadcast %235 : vector<16x1xf32> to vector<16x32xf32>
    %237 = arith.subf %231, %236 : vector<16x32xf32>
    %238 = arith.mulf %237, %237 : vector<16x32xf32>
    %cst_73 = arith.constant dense<0.000000e+00> : vector<16xf32>
    %239 = vector.multi_reduction <add>, %238, %cst_73 [1] : vector<16x32xf32> to vector<16xf32>
    %240 = vector.shape_cast %239 : vector<16xf32> to vector<16x1xf32>
    %cst_74 = arith.constant 3.200000e+01 : f32
    %241 = vector.broadcast %cst_74 : f32 to vector<16x1xf32>
    %242 = arith.divf %240, %241 : vector<16x1xf32>
    %243 = vector.broadcast %235 : vector<16x1xf32> to vector<16x32xf32>
    %244 = arith.subf %231, %243 : vector<16x32xf32>
    %cst_75 = arith.constant 9.99999996E-13 : f32
    %245 = vector.broadcast %cst_75 : f32 to vector<16x1xf32>
    %246 = arith.addf %242, %245 : vector<16x1xf32>
    %247 = math.rsqrt %246 : vector<16x1xf32>
    %248 = vector.broadcast %247 : vector<16x1xf32> to vector<16x32xf32>
    %249 = arith.mulf %244, %248 : vector<16x32xf32>
    %250 = vector.broadcast %168 : vector<1x32xf32> to vector<16x32xf32>
    %251 = arith.mulf %249, %250 : vector<16x32xf32>
    %252 = vector.broadcast %169 : vector<1x32xf32> to vector<16x32xf32>
    %253 = arith.addf %251, %252 : vector<16x32xf32>
    %254 = arith.truncf %253 : vector<16x32xf32> to vector<16x32xbf16>
    %c1_76 = arith.constant 1 : index
    %c0_77 = arith.constant 0 : index
    %c0_78 = arith.constant 0 : index
    %255 = vector.load %arg7[%c1_76, %c0_77, %c0_78] : memref<2x32x64xbf16, #tpu.memory_space<vmem>>, vector<1x32x64xbf16>
    %256 = vector.shape_cast %255 : vector<1x32x64xbf16> to vector<32x64xbf16>
    %cst_79 = arith.constant dense<0.000000e+00> : vector<16x64xf32>
    %257 = tpu.matmul %254, %256, %cst_79 {dimension_numbers = #tpu.dot_dimension_numbers<[1], [0], [0], [1], [0, 0, 1, 1], [], []>} : vector<16x32xbf16>, vector<32x64xbf16>, vector<16x64xf32> -> vector<16x64xf32>
    %258 = vector.broadcast %170 : vector<1x64xf32> to vector<16x64xf32>
    %259 = arith.addf %257, %258 : vector<16x64xf32>
    %cst_80 = arith.constant 5.000000e-01 : f32
    %260 = vector.broadcast %cst_80 : f32 to vector<16x64xf32>
    %261 = arith.mulf %260, %259 : vector<16x64xf32>
    %cst_81 = arith.constant 4.471500e-02 : f32
    %262 = vector.broadcast %cst_81 : f32 to vector<16x64xf32>
    %263 = arith.mulf %262, %259 : vector<16x64xf32>
    %264 = arith.mulf %263, %259 : vector<16x64xf32>
    %265 = arith.mulf %264, %259 : vector<16x64xf32>
    %266 = arith.addf %259, %265 : vector<16x64xf32>
    %cst_82 = arith.constant 0.797884583 : f32
    %267 = vector.broadcast %cst_82 : f32 to vector<16x64xf32>
    %268 = arith.mulf %267, %266 : vector<16x64xf32>
    %269 = math.tanh %268 : vector<16x64xf32>
    %cst_83 = arith.constant 1.000000e+00 : f32
    %270 = vector.broadcast %cst_83 : f32 to vector<16x64xf32>
    %271 = arith.addf %270, %269 : vector<16x64xf32>
    %272 = arith.mulf %261, %271 : vector<16x64xf32>
    %273 = arith.truncf %272 : vector<16x64xf32> to vector<16x64xbf16>
    %c1_84 = arith.constant 1 : index
    %c0_85 = arith.constant 0 : index
    %c0_86 = arith.constant 0 : index
    %274 = vector.load %arg8[%c1_84, %c0_85, %c0_86] : memref<2x64x32xbf16, #tpu.memory_space<vmem>>, vector<1x64x32xbf16>
    %275 = vector.shape_cast %274 : vector<1x64x32xbf16> to vector<64x32xbf16>
    %cst_87 = arith.constant dense<0.000000e+00> : vector<16x32xf32>
    %276 = tpu.matmul %273, %275, %cst_87 {dimension_numbers = #tpu.dot_dimension_numbers<[1], [0], [0], [1], [0, 0, 1, 1], [], []>} : vector<16x64xbf16>, vector<64x32xbf16>, vector<16x32xf32> -> vector<16x32xf32>
    %277 = vector.broadcast %171 : vector<1x32xf32> to vector<16x32xf32>
    %278 = arith.addf %276, %277 : vector<16x32xf32>
    %279 = arith.addf %253, %278 : vector<16x32xf32>
    %cst_88 = arith.constant dense<0.000000e+00> : vector<16xf32>
    %280 = vector.multi_reduction <add>, %279, %cst_88 [1] : vector<16x32xf32> to vector<16xf32>
    %281 = vector.shape_cast %280 : vector<16xf32> to vector<16x1xf32>
    %cst_89 = arith.constant 3.200000e+01 : f32
    %282 = vector.broadcast %cst_89 : f32 to vector<16x1xf32>
    %283 = arith.divf %281, %282 : vector<16x1xf32>
    %284 = vector.broadcast %283 : vector<16x1xf32> to vector<16x32xf32>
    %285 = arith.subf %279, %284 : vector<16x32xf32>
    %286 = arith.mulf %285, %285 : vector<16x32xf32>
    %cst_90 = arith.constant dense<0.000000e+00> : vector<16xf32>
    %287 = vector.multi_reduction <add>, %286, %cst_90 [1] : vector<16x32xf32> to vector<16xf32>
    %288 = vector.shape_cast %287 : vector<16xf32> to vector<16x1xf32>
    %cst_91 = arith.constant 3.200000e+01 : f32
    %289 = vector.broadcast %cst_91 : f32 to vector<16x1xf32>
    %290 = arith.divf %288, %289 : vector<16x1xf32>
    %291 = vector.broadcast %283 : vector<16x1xf32> to vector<16x32xf32>
    %292 = arith.subf %279, %291 : vector<16x32xf32>
    %cst_92 = arith.constant 9.99999996E-13 : f32
    %293 = vector.broadcast %cst_92 : f32 to vector<16x1xf32>
    %294 = arith.addf %290, %293 : vector<16x1xf32>
    %295 = math.rsqrt %294 : vector<16x1xf32>
    %296 = vector.broadcast %295 : vector<16x1xf32> to vector<16x32xf32>
    %297 = arith.mulf %292, %296 : vector<16x32xf32>
    %298 = vector.broadcast %172 : vector<1x32xf32> to vector<16x32xf32>
    %299 = arith.mulf %297, %298 : vector<16x32xf32>
    %300 = vector.broadcast %173 : vector<1x32xf32> to vector<16x32xf32>
    %301 = arith.addf %299, %300 : vector<16x32xf32>
    %c0_93 = arith.constant 0 : index
    %c0_94 = arith.constant 0 : index
    %302 = vector.load %arg13[%c0_93, %c0_94] : memref<16x32xf32, #tpu.memory_space<vmem>>, vector<16x32xf32>
    tpu.vector_store %arg13[%c0_93, %c0_94], %301 {strides = array<i32>} : memref<16x32xf32, #tpu.memory_space<vmem>>, vector<16x32xf32>,
    %c0_95 = arith.constant 0 : index
    %c0_96 = arith.constant 0 : index
    %303 = memref.load %arg1[%c0_95, %c0_96] : memref<2x2xi32, #tpu.memory_space<smem>>
    %c0_i32 = arith.constant 0 : i32
    %304 = arith.addi %c0_i32, %303 : i32
    %305 = arith.index_cast %304 : i32 to index
    %c0_97 = arith.constant 0 : index
    %306 = vector.load %arg13[%305, %c0_97] : memref<16x32xf32, #tpu.memory_space<vmem>>, vector<1x32xf32>
    %c1_98 = arith.constant 1 : index
    %c0_99 = arith.constant 0 : index
    %307 = memref.load %arg1[%c1_98, %c0_99] : memref<2x2xi32, #tpu.memory_space<smem>>
    %c8_i32 = arith.constant 8 : i32
    %308 = arith.addi %c8_i32, %307 : i32
    %309 = arith.index_cast %308 : i32 to index
    %c0_100 = arith.constant 0 : index
    %310 = vector.load %arg13[%309, %c0_100] : memref<16x32xf32, #tpu.memory_space<vmem>>, vector<1x32xf32>
    %c0_101 = arith.constant 0 : index
    %c1_102 = arith.constant 1 : index
    %311 = memref.load %arg1[%c0_101, %c1_102] : memref<2x2xi32, #tpu.memory_space<smem>>
    %c0_i32_103 = arith.constant 0 : i32
    %312 = arith.addi %c0_i32_103, %311 : i32
    %313 = arith.index_cast %312 : i32 to index
    %c0_104 = arith.constant 0 : index
    %314 = vector.load %arg13[%313, %c0_104] : memref<16x32xf32, #tpu.memory_space<vmem>>, vector<1x32xf32>
    %c1_105 = arith.constant 1 : index
    %c1_106 = arith.constant 1 : index
    %315 = memref.load %arg1[%c1_105, %c1_106] : memref<2x2xi32, #tpu.memory_space<smem>>
    %c8_i32_107 = arith.constant 8 : i32
    %316 = arith.addi %c8_i32_107, %315 : i32
    %317 = arith.index_cast %316 : i32 to index
    %c0_108 = arith.constant 0 : index
    %318 = vector.load %arg13[%317, %c0_108] : memref<16x32xf32, #tpu.memory_space<vmem>>, vector<1x32xf32>
    %319 = tpu.concatenate %306, %310 in 0 : vector<1x32xf32>, vector<1x32xf32> -> vector<2x32xf32>
    %320 = tpu.concatenate %314, %318 in 0 : vector<1x32xf32>, vector<1x32xf32> -> vector<2x32xf32>
    %321 = arith.truncf %319 : vector<2x32xf32> to vector<2x32xbf16>
    %c0_109 = arith.constant 0 : index
    %c0_110 = arith.constant 0 : index
    %322 = vector.load %arg10[%c0_109, %c0_110] : memref<64x32xbf16, #tpu.memory_space<vmem>>, vector<32x32xbf16>
    %cst_111 = arith.constant dense<0.000000e+00> : vector<2x32xf32>
    %323 = tpu.matmul %321, %322, %cst_111 {dimension_numbers = #tpu.dot_dimension_numbers<[1], [0], [0], [1], [0, 0, 1, 1], [], []>} : vector<2x32xbf16>, vector<32x32xbf16>, vector<2x32xf32> -> vector<2x32xf32>
    %324 = arith.truncf %320 : vector<2x32xf32> to vector<2x32xbf16>
    %c32 = arith.constant 32 : index
    %c0_112 = arith.constant 0 : index
    %325 = vector.load %arg10[%c32, %c0_112] : memref<64x32xbf16, #tpu.memory_space<vmem>>, vector<32x32xbf16>
    %cst_113 = arith.constant dense<0.000000e+00> : vector<2x32xf32>
    %326 = tpu.matmul %324, %325, %cst_113 {dimension_numbers = #tpu.dot_dimension_numbers<[1], [0], [0], [1], [0, 0, 1, 1], [], []>} : vector<2x32xbf16>, vector<32x32xbf16>, vector<2x32xf32> -> vector<2x32xf32>
    %327 = arith.addf %323, %326 : vector<2x32xf32>
    %c0_114 = arith.constant 0 : index
    %c0_115 = arith.constant 0 : index
    %328 = vector.load %arg11[%c0_114, %c0_115] : memref<1x32xf32, #tpu.memory_space<vmem>>, vector<1x32xf32>
    %329 = vector.broadcast %328 : vector<1x32xf32> to vector<2x32xf32>
    %330 = arith.addf %327, %329 : vector<2x32xf32>
    %c0_116 = arith.constant 0 : index
    %c0_117 = arith.constant 0 : index
    %331 = vector.load %arg12[%c0_116, %c0_117] : memref<2x32xf32, #tpu.memory_space<vmem>>, vector<2x32xf32>
    tpu.vector_store %arg12[%c0_116, %c0_117], %330 {strides = array<i32>} : memref<2x32xf32, #tpu.memory_space<vmem>>, vector<2x32xf32>,
    return
  }
  func.func @transform_0(%arg0: i32, %arg1: memref<2x2xi32, #tpu.memory_space<smem>>) -> (i32, i32) {
    %c0_i32 = arith.constant 0 : i32
    %c0_i32_0 = arith.constant 0 : i32
    %c0_i32_1 = arith.constant 0 : i32
    return %c0_i32, %c0_i32_0 : i32, i32
  }
  func.func @transform_1(%arg0: i32, %arg1: memref<2x2xi32, #tpu.memory_space<smem>>) -> (i32, i32, i32) {
    %c0_i32 = arith.constant 0 : i32
    %c0_i32_0 = arith.constant 0 : i32
    %c0_i32_1 = arith.constant 0 : i32
    %c0_i32_2 = arith.constant 0 : i32
    return %c0_i32, %c0_i32_0, %c0_i32_1 : i32, i32, i32
  }
  func.func @transform_2(%arg0: i32, %arg1: memref<2x2xi32, #tpu.memory_space<smem>>) -> (i32, i32) {
    %c0_i32 = arith.constant 0 : i32
    %c0_i32_0 = arith.constant 0 : i32
    %c0_i32_1 = arith.constant 0 : i32
    return %c0_i32, %c0_i32_0 : i32, i32
  }
  func.func @transform_3(%arg0: i32, %arg1: memref<2x2xi32, #tpu.memory_space<smem>>) -> (i32, i32, i32) {
    %c0_i32 = arith.constant 0 : i32
    %c0_i32_0 = arith.constant 0 : i32
    %c0_i32_1 = arith.constant 0 : i32
    %c0_i32_2 = arith.constant 0 : i32
    return %c0_i32, %c0_i32_0, %c0_i32_1 : i32, i32, i32
  }
  func.func @transform_4(%arg0: i32, %arg1: memref<2x2xi32, #tpu.memory_space<smem>>) -> (i32, i32, i32) {
    %c0_i32 = arith.constant 0 : i32
    %c0_i32_0 = arith.constant 0 : i32
    %c0_i32_1 = arith.constant 0 : i32
    %c0_i32_2 = arith.constant 0 : i32
    return %c0_i32, %c0_i32_0, %c0_i32_1 : i32, i32, i32
  }
  func.func @transform_5(%arg0: i32, %arg1: memref<2x2xi32, #tpu.memory_space<smem>>) -> (i32, i32, i32) {
    %c0_i32 = arith.constant 0 : i32
    %c0_i32_0 = arith.constant 0 : i32
    %c0_i32_1 = arith.constant 0 : i32
    %c0_i32_2 = arith.constant 0 : i32
    return %c0_i32, %c0_i32_0, %c0_i32_1 : i32, i32, i32
  }
  func.func @transform_6(%arg0: i32, %arg1: memref<2x2xi32, #tpu.memory_space<smem>>) -> (i32, i32, i32) {
    %c0_i32 = arith.constant 0 : i32
    %c0_i32_0 = arith.constant 0 : i32
    %c0_i32_1 = arith.constant 0 : i32
    %c0_i32_2 = arith.constant 0 : i32
    return %c0_i32, %c0_i32_0, %c0_i32_1 : i32, i32, i32
  }
  func.func @transform_7(%arg0: i32, %arg1: memref<2x2xi32, #tpu.memory_space<smem>>) -> (i32, i32, i32) {
    %c0_i32 = arith.constant 0 : i32
    %c0_i32_0 = arith.constant 0 : i32
    %c0_i32_1 = arith.constant 0 : i32
    %c0_i32_2 = arith.constant 0 : i32
    return %c0_i32, %c0_i32_0, %c0_i32_1 : i32, i32, i32
  }
  func.func @transform_8(%arg0: i32, %arg1: memref<2x2xi32, #tpu.memory_space<smem>>) -> (i32, i32) {
    %c0_i32 = arith.constant 0 : i32
    %c0_i32_0 = arith.constant 0 : i32
    %c0_i32_1 = arith.constant 0 : i32
    return %c0_i32, %c0_i32_0 : i32, i32
  }
  func.func @transform_9(%arg0: i32, %arg1: memref<2x2xi32, #tpu.memory_space<smem>>) -> (i32, i32) {
    %c0_i32 = arith.constant 0 : i32
    %c0_i32_0 = arith.constant 0 : i32
    %c0_i32_1 = arith.constant 0 : i32
    return %c0_i32, %c0_i32_0 : i32, i32
  }
  func.func @transform_10(%arg0: i32, %arg1: memref<2x2xi32, #tpu.memory_space<smem>>) -> (i32, i32) {
    %c0_i32 = arith.constant 0 : i32
    %c0_i32_0 = arith.constant 0 : i32
    %c0_i32_1 = arith.constant 0 : i32
    return %c0_i32, %c0_i32_0 : i32, i32
  }
}

</mosaic_0001>

<llo_original>
// kernel: bert_encoder_forward.1
$region0: #{bert_encoder_forward.1}
  #allocation0 [shape = 'u32[]', space=smem, size = 0x4, offset = 0x4, fixed_abs, tag = 'smem constant byte address 0x4 - core index']
  #allocation1 [shape = 'u32[144,128]{1,0:T(1,128)}', space=vmem, size = 0x12000, scoped, tag = 'internal scratch']
  #allocation2 [shape = 'f32[16,32]{1,0:T(8,128)}', space=vmem, size = 0x2000, scoped, tag = 'scratch operand']
  #allocation3 [shape = 's32[1]{0}', space=sflag, size = 0x4, scoped, tag = 'scoped memory for bert_encoder_forward.1']
  #allocation4 [shape = 'u8[1024]{0}', space=smem, size = 0x400, scoped, tag = 'prefetched SMEM operand 0']
  %s0 = inlined_call_operand.vmem [shape: s32[2,2], index: 0, kind: input, shape index: {}]
  %s1 = inlined_call_operand.vmem [shape: f32[16,32], index: 1, kind: input, shape index: {}]
  %s2 = inlined_call_operand.vmem [shape: f32[2,1,8], index: 2, kind: input, shape index: {}]
  %s3 = inlined_call_operand.vmem [shape: f32[2,32], index: 3, kind: input, shape index: {}]
  %s4 = inlined_call_operand.vmem [shape: bf16[2,32,96], index: 4, kind: input, shape index: {}]
  %s5 = inlined_call_operand.vmem [shape: bf16[2,32,32], index: 5, kind: input, shape index: {}]
  %s6 = inlined_call_operand.vmem [shape: bf16[2,32,64], index: 6, kind: input, shape index: {}]
  %s7 = inlined_call_operand.vmem [shape: bf16[2,64,32], index: 7, kind: input, shape index: {}]
  %s8 = inlined_call_operand.vmem [shape: f32[2,8,96], index: 8, kind: input, shape index: {}]
  %s9 = inlined_call_operand.vmem [shape: bf16[64,32], index: 9, kind: input, shape index: {}]
  %s10 = inlined_call_operand.vmem [shape: f32[1,32], index: 10, kind: input, shape index: {}]
  %s11 = inlined_call_operand.hbm [shape: f32[2,32], index: 11, kind: output, shape index: {}]
  %s12 = sld [smem:[#allocation0]]
  $region50: #{bert_encoder_forward.1} parent=0
    _
  %s14 = ssub.s32 1, %s12
  %s15 = scalar_select 0, %s14, %s12
  %s16 = sshll.u32 %s0, 4
  %s17 = int_to_ptr.vmem [resolvable:$true] %s16
  %19 = dma.vmem_to_smem %s17, 32, [#allocation4], [#allocation3]
  %20 = dma.done [#allocation3], 32
  %21 = sfence
  $region1: #{bert_encoder_forward.1} parent=0
    #allocation5 [shape = 'u8[1024]{0}', space=vmem, size = 0x400, scoped, tag = 'output window, operand 0, single buffered']
    #allocation6 [shape = 's32[1]{0}', space=sflag, size = 0x4, scoped, tag = 'scoped memory for bert_encoder_forward.1']
    %22 = vsyncpa [#allocation6], 0
    // Predicated region
    $region2: #{bert_encoder_forward.1} parent=1 // pred_check
      _
    $region3: #{bert_encoder_forward.1} parent=1 // pred_check_branch
      %24 = sbr.rel (0) target = $region5
    $region4: #{bert_encoder_forward.1} parent=1 // pred_region
      _
    $region5: #{bert_encoder_forward.1} parent=1 // pred_fallthru
      _
    // Predicated region
    $region6: #{bert_encoder_forward.1} parent=1 // pred_check
      _
    $region7: #{bert_encoder_forward.1} parent=1 // pred_check_branch
      %26 = sbr.rel (0) target = $region9
    $region8: #{bert_encoder_forward.1} parent=1 // pred_region
      _
    $region9: #{bert_encoder_forward.1} parent=1 // pred_fallthru
      _
    // Predicated region
    $region10: #{bert_encoder_forward.1} parent=1 // pred_check
      _
    $region11: #{bert_encoder_forward.1} parent=1 // pred_check_branch
      %28 = sbr.rel (0) target = $region13
    $region12: #{bert_encoder_forward.1} parent=1 // pred_region
      _
    $region13: #{bert_encoder_forward.1} parent=1 // pred_fallthru
      _
    // Predicated region
    $region14: #{bert_encoder_forward.1} parent=1 // pred_check
      _
    $region15: #{bert_encoder_forward.1} parent=1 // pred_check_branch
      %30 = sbr.rel (0) target = $region17
    $region16: #{bert_encoder_forward.1} parent=1 // pred_region
      _
    $region17: #{bert_encoder_forward.1} parent=1 // pred_fallthru
      _
    // Predicated region
    $region18: #{bert_encoder_forward.1} parent=1 // pred_check
      _
    $region19: #{bert_encoder_forward.1} parent=1 // pred_check_branch
      %32 = sbr.rel (0) target = $region21
    $region20: #{bert_encoder_forward.1} parent=1 // pred_region
      _
    $region21: #{bert_encoder_forward.1} parent=1 // pred_fallthru
      _
    // Predicated region
    $region22: #{bert_encoder_forward.1} parent=1 // pred_check
      _
    $region23: #{bert_encoder_forward.1} parent=1 // pred_check_branch
      %34 = sbr.rel (0) target = $region25
    $region24: #{bert_encoder_forward.1} parent=1 // pred_region
      _
    $region25: #{bert_encoder_forward.1} parent=1 // pred_fallthru
      _
    // Predicated region
    $region26: #{bert_encoder_forward.1} parent=1 // pred_check
      _
    $region27: #{bert_encoder_forward.1} parent=1 // pred_check_branch
      %36 = sbr.rel (0) target = $region29
    $region28: #{bert_encoder_forward.1} parent=1 // pred_region
      _
    $region29: #{bert_encoder_forward.1} parent=1 // pred_fallthru
      _
    // Predicated region
    $region30: #{bert_encoder_forward.1} parent=1 // pred_check
      _
    $region31: #{bert_encoder_forward.1} parent=1 // pred_check_branch
      %38 = sbr.rel (0) target = $region33
    $region32: #{bert_encoder_forward.1} parent=1 // pred_region
      _
    $region33: #{bert_encoder_forward.1} parent=1 // pred_fallthru
      _
    // Predicated region
    $region34: #{bert_encoder_forward.1} parent=1 // pred_check
      _
    $region35: #{bert_encoder_forward.1} parent=1 // pred_check_branch
      %40 = sbr.rel (0) target = $region37
    $region36: #{bert_encoder_forward.1} parent=1 // pred_region
      _
    $region37: #{bert_encoder_forward.1} parent=1 // pred_fallthru
      _
    // Predicated region
    $region38: #{bert_encoder_forward.1} parent=1 // pred_check
      _
    $region39: #{bert_encoder_forward.1} parent=1 // pred_check_branch
      %42 = sbr.rel (0) target = $region41
    $region40: #{bert_encoder_forward.1} parent=1 // pred_region
      _
    $region41: #{bert_encoder_forward.1} parent=1 // pred_fallthru
      _
    %v44 = vld [vmem:[%s1] sm:$0xff]
    %v45 = vld [vmem:[%s1 + $0x8] sm:$0xff]
    %v46 = vld [vmem:[%s3] sm:$0x1]
    %v47 = vld [vmem:[%s3 + $0x1] sm:$0x1]
    %vm48 = vcmask 261120
    %v49 = vsel %vm48, %v44, 0.0
    %50 = vadd.xlane.f32.xlu0 %v49
    %v51 = vpop.xlane.xlu0 %50
    %v52 = vsel %vm48, %v45, 0.0
    %53 = vadd.xlane.f32.xlu0 %v52
    %v54 = vpop.xlane.xlu0 %53
    %v55 = vrcp.pop 32.0
    %v56 = vmul.f32 %v51, %v55
    %v57 = vmul.f32 %v54, %v55
    %v58 = vsub.f32 %v44, %v56
    %v59 = vsub.f32 %v45, %v57
    %v60 = vmul.f32 %v58, %v58
    %v61 = vmul.f32 %v59, %v59
    %v62 = vsel %vm48, %v60, 0.0
    %63 = vadd.xlane.f32.xlu0 %v62
    %v64 = vpop.xlane.xlu0 %63
    %v65 = vsel %vm48, %v61, 0.0
    %66 = vadd.xlane.f32.xlu0 %v65
    %v67 = vpop.xlane.xlu0 %66
    %v68 = vmul.f32 %v64, %v55
    %v69 = vmul.f32 %v67, %v55
    %v70 = vadd.f32 %v68, 1e-12
    %v71 = vadd.f32 %v69, 1e-12
    %v72 = vrsqrt.pop %v70
    %v73 = vrsqrt.pop %v71
    %v74 = vmul.f32 %v58, %v72
    %v75 = vmul.f32 %v59, %v73
    %v76 = vlaneseq
    %v77 = vshrl.u32 %v76, 7
    %v78 = vsub.s32 0, %v77
    %v79 = vrot.slane %v46, %v78
    %v80 = vmul.f32 %v74, %v79
    %v81 = vmul.f32 %v75, %v79
    %v82 = vlaneseq
    %v83 = vshrl.u32 %v82, 7
    %v84 = vsub.s32 0, %v83
    %v85 = vrot.slane %v47, %v84
    %v86 = vadd.f32 %v80, %v85
    %v87 = vadd.f32 %v81, %v85
    %v88 = vld [vmem:[%s2] sm:$0x1]
    %v89 = vld [vmem:[%s2 + $0x1] sm:$0x1]
    %v90 = vld [vmem:[%s8] sm:$0xff]
    %v91 = vpack.c.bf16 %v87, %v86
    %v92 = vld [vmem:[%s4] sm:$0xf]
    %v93 = vld [vmem:[%s4 + $0x4] sm:$0xf]
    %v94 = vld [vmem:[%s4 + $0x8] sm:$0xf]
    %v95 = vld [vmem:[%s4 + $0xc] sm:$0xf]
    %v96 = vlaneseq
    %v97 = vshrl.u32 %v96, 7
    %v98 = vsub.s32 0, %v97
    %v99 = vrot.slane %v90, %v98
    %v104 = vunpack.c.l.b16 %v92
    %v105 = vunpack.c.l.b16 %v93
    %v106 = vunpack.c.l.b16 %v94
    %v107 = vunpack.c.l.b16 %v95
    %v108 = vpack.c.b16 %v105, %v104
    %v109 = vpack.c.b16 %v107, %v106
    %v113 = vsel %vm48, %v91, 0
    %115 = vmatprep.subr.bf16.mxu0 0
    %116 = vmatpush1.bf16.msra.mxu0 %v108
    %117 = vmatprep.subr.bf16.mxu0 0
    %118 = vmatpush1.bf16.msra.mxu0 %v109
    %119 = vmatprep.subr.bf16.mxu0 0
    %120 = vmatpush1.bf16.msra.mxu0 0
    %121 = vmatprep.subr.bf16.mxu0 0
    %122 = vmatpush1.bf16.msra.mxu0 0
    %123 = vmatprep.subr.bf16.mxu0 0
    %124 = vmatpush1.bf16.msra.mxu0 0
    %125 = vmatprep.subr.bf16.mxu0 0
    %126 = vmatpush1.bf16.msra.mxu0 0
    %127 = vmatprep.subr.bf16.mxu0 0
    %128 = vmatpush1.bf16.msra.mxu0 0
    %129 = vmatprep.subr.bf16.mxu0 0
    %130 = vmatpush1.bf16.msra.mxu0 0
    %131 = vmatprep.subr.bf16.mxu0 0
    %132 = vmatpush1.bf16.msra.mxu0 0
    %133 = vmatprep.subr.bf16.mxu0 0
    %134 = vmatpush1.bf16.msra.mxu0 0
    %135 = vmatprep.subr.bf16.mxu0 0
    %136 = vmatpush1.bf16.msra.mxu0 0
    %137 = vmatprep.subr.bf16.mxu0 0
    %138 = vmatpush1.bf16.msra.mxu0 0
    %139 = vmatprep.subr.bf16.mxu0 0
    %140 = vmatpush1.bf16.msra.mxu0 0
    %141 = vmatprep.subr.bf16.mxu0 0
    %142 = vmatpush1.bf16.msra.mxu0 0
    %143 = vmatprep.subr.bf16.mxu0 0
    %144 = vmatpush1.bf16.msra.mxu0 0
    %145 = vmatprep.subr.bf16.mxu0 0
    %146 = vmatpush1.bf16.msra.mxu0 0
    %147 = vmatprep.mubr.bf16.mxu0 0
    %148 = vmatmul.mubr.bf16.gmra.mrb[0].mxu0 %v113
    %v149 = vpop.f32.mrb[0].mxu0
    %v150 = vadd.f32 %v99, %v149
    %v151 = vpop.f32.mrb[0].mxu0
    %v152 = vpop.f32.mrb[0].mxu0
    %v153 = vadd.f32 %v99, %v152
    %v154 = vpop.f32.mrb[0].mxu0
    %155 = vdwg.mxu0
    %v156 = vpack.c.bf16 %v150, %v150
    %v157 = vpack.c.bf16 %v153, %v153
    %v160 = vlaneseq
    %v161 = vshrl.u32 %v160, 7
    %v162 = vsub.s32 0, %v161
    %v163 = vrot.slane %v88, %v162
    %v164 = vlaneseq
    %v165 = vshrl.u32 %v164, 7
    %v166 = vsub.s32 0, %v165
    %v167 = vrot.slane %v89, %v166
    %171 = vrot.lane.b32.xlu0 %v156, 112
    %v172 = vpop.permute.xlu0 %171
    %vm173 = vcmask 130048
    %v175 = vsel %vm173, %v156, 0
    %v178 = vsel %vm173, %v172, 0
    %180 = vmatprep.subr.bf16.mxu0 0
    %181 = vmatpush1.bf16.xpose.msra.mxu0 %v178
    %182 = vmatprep.subr.bf16.mxu0 0
    %183 = vmatpush1.bf16.xpose.msra.mxu0 0
    %184 = vmatprep.subr.bf16.mxu0 0
    %185 = vmatpush1.bf16.xpose.msra.mxu0 0
    %186 = vmatprep.subr.bf16.mxu0 0
    %187 = vmatpush1.bf16.xpose.msra.mxu0 0
    %188 = vmatprep.subr.bf16.mxu0 0
    %189 = vmatpush1.bf16.xpose.msra.mxu0 0
    %190 = vmatprep.subr.bf16.mxu0 0
    %191 = vmatpush1.bf16.xpose.msra.mxu0 0
    %192 = vmatprep.subr.bf16.mxu0 0
    %193 = vmatpush1.bf16.xpose.msra.mxu0 0
    %194 = vmatprep.subr.bf16.mxu0 0
    %195 = vmatpush1.bf16.xpose.msra.mxu0 0
    %196 = vmatprep.subr.bf16.mxu0 0
    %197 = vmatpush1.bf16.xpose.msra.mxu0 0
    %198 = vmatprep.subr.bf16.mxu0 0
    %199 = vmatpush1.bf16.xpose.msra.mxu0 0
    %200 = vmatprep.subr.bf16.mxu0 0
    %201 = vmatpush1.bf16.xpose.msra.mxu0 0
    %202 = vmatprep.subr.bf16.mxu0 0
    %203 = vmatpush1.bf16.xpose.msra.mxu0 0
    %204 = vmatprep.subr.bf16.mxu0 0
    %205 = vmatpush1.bf16.xpose.msra.mxu0 0
    %206 = vmatprep.subr.bf16.mxu0 0
    %207 = vmatpush1.bf16.xpose.msra.mxu0 0
    %208 = vmatprep.subr.bf16.mxu0 0
    %209 = vmatpush1.bf16.xpose.msra.mxu0 0
    %210 = vmatprep.subr.bf16.mxu0 0
    %211 = vmatpush1.bf16.xpose.msra.mxu0 0
    %212 = vmatprep.mubr.bf16.mxu0 0
    %213 = vmatmul.mubr.bf16.gmra.mrb[0].mxu0 %v175
    %v214 = vpop.f32.mrb[0].mxu0
    %v215 = vadd.f32 %v163, %v214
    %v216 = vpop.f32.mrb[0].mxu0
    %v217 = vpop.f32.mrb[0].mxu0
    %v218 = vpop.f32.mrb[0].mxu0
    %219 = vdwg.mxu0
    %221 = vrot.lane.b32.xlu0 %v157, 112
    %v222 = vpop.permute.xlu0 %221
    %v224 = vsel %vm173, %v157, 0
    %v227 = vsel %vm173, %v222, 0
    %229 = vmatprep.subr.bf16.mxu0 0
    %230 = vmatpush1.bf16.xpose.msra.mxu0 %v227
    %231 = vmatprep.subr.bf16.mxu0 0
    %232 = vmatpush1.bf16.xpose.msra.mxu0 0
    %233 = vmatprep.subr.bf16.mxu0 0
    %234 = vmatpush1.bf16.xpose.msra.mxu0 0
    %235 = vmatprep.subr.bf16.mxu0 0
    %236 = vmatpush1.bf16.xpose.msra.mxu0 0
    %237 = vmatprep.subr.bf16.mxu0 0
    %238 = vmatpush1.bf16.xpose.msra.mxu0 0
    %239 = vmatprep.subr.bf16.mxu0 0
    %240 = vmatpush1.bf16.xpose.msra.mxu0 0
    %241 = vmatprep.subr.bf16.mxu0 0
    %242 = vmatpush1.bf16.xpose.msra.mxu0 0
    %243 = vmatprep.subr.bf16.mxu0 0
    %244 = vmatpush1.bf16.xpose.msra.mxu0 0
    %245 = vmatprep.subr.bf16.mxu0 0
    %246 = vmatpush1.bf16.xpose.msra.mxu0 0
    %247 = vmatprep.subr.bf16.mxu0 0
    %248 = vmatpush1.bf16.xpose.msra.mxu0 0
    %249 = vmatprep.subr.bf16.mxu0 0
    %250 = vmatpush1.bf16.xpose.msra.mxu0 0
    %251 = vmatprep.subr.bf16.mxu0 0
    %252 = vmatpush1.bf16.xpose.msra.mxu0 0
    %253 = vmatprep.subr.bf16.mxu0 0
    %254 = vmatpush1.bf16.xpose.msra.mxu0 0
    %255 = vmatprep.subr.bf16.mxu0 0
    %256 = vmatpush1.bf16.xpose.msra.mxu0 0
    %257 = vmatprep.subr.bf16.mxu0 0
    %258 = vmatpush1.bf16.xpose.msra.mxu0 0
    %259 = vmatprep.subr.bf16.mxu0 0
    %260 = vmatpush1.bf16.xpose.msra.mxu0 0
    %261 = vmatprep.mubr.bf16.mxu0 0
    %262 = vmatmul.mubr.bf16.gmra.mrb[0].mxu0 %v224
    %v263 = vpop.f32.mrb[0].mxu0
    %v264 = vadd.f32 %v167, %v263
    %v265 = vpop.f32.mrb[0].mxu0
    %v266 = vpop.f32.mrb[0].mxu0
    %v267 = vpop.f32.mrb[0].mxu0
    %268 = vdwg.mxu0
    %vm269 = vcmask 64512
    %v270 = vsel %vm269, %v215, -inf
    %271 = vmax.xlane.f32.xlu0 %v270
    %v272 = vpop.xlane.xlu0 %271
    %v273 = vsel %vm269, %v264, -inf
    %274 = vmax.xlane.f32.xlu0 %v273
    %v275 = vpop.xlane.xlu0 %274
    %v276 = vsub.f32 %v215, %v272
    %v277 = vsub.f32 %v264, %v275
    %v278 = vmul.f32 %v276, 1.442695
    %v279 = vpow.pop %v278
    %v280 = vmul.f32 %v277, 1.442695
    %v281 = vpow.pop %v280
    %v282 = vsel %vm269, %v279, 0.0
    %283 = vadd.xlane.f32.xlu0 %v282
    %v284 = vpop.xlane.xlu0 %283
    %v285 = vsel %vm269, %v281, 0.0
    %286 = vadd.xlane.f32.xlu0 %v285
    %v287 = vpop.xlane.xlu0 %286
    %v288 = vrcp.pop %v284
    %v289 = vrcp.pop %v287
    %v290 = vmul.f32 %v279, %v288
    %v291 = vmul.f32 %v281, %v289
    %v292 = vpack.c.bf16 %v290, %v290
    %v293 = vpack.c.bf16 %v291, %v291
    %294 = vrot.lane.b32.xlu0 %v156, 96
    %v295 = vpop.permute.xlu0 %294
    %v297 = vsel %vm269, %v292, 0
    %vm299 = vcmask 1043456
    %v301 = vsel %vm299, %v295, 0
    %303 = vmatprep.subr.bf16.mxu0 0
    %304 = vmatpush1.bf16.msra.mxu0 %v301
    %305 = vmatprep.subr.bf16.mxu0 0
    %306 = vmatpush1.bf16.msra.mxu0 0
    %307 = vmatprep.subr.bf16.mxu0 0
    %308 = vmatpush1.bf16.msra.mxu0 0
    %309 = vmatprep.subr.bf16.mxu0 0
    %310 = vmatpush1.bf16.msra.mxu0 0
    %311 = vmatprep.subr.bf16.mxu0 0
    %312 = vmatpush1.bf16.msra.mxu0 0
    %313 = vmatprep.subr.bf16.mxu0 0
    %314 = vmatpush1.bf16.msra.mxu0 0
    %315 = vmatprep.subr.bf16.mxu0 0
    %316 = vmatpush1.bf16.msra.mxu0 0
    %317 = vmatprep.subr.bf16.mxu0 0
    %318 = vmatpush1.bf16.msra.mxu0 0
    %319 = vmatprep.subr.bf16.mxu0 0
    %320 = vmatpush1.bf16.msra.mxu0 0
    %321 = vmatprep.subr.bf16.mxu0 0
    %322 = vmatpush1.bf16.msra.mxu0 0
    %323 = vmatprep.subr.bf16.mxu0 0
    %324 = vmatpush1.bf16.msra.mxu0 0
    %325 = vmatprep.subr.bf16.mxu0 0
    %326 = vmatpush1.bf16.msra.mxu0 0
    %327 = vmatprep.subr.bf16.mxu0 0
    %328 = vmatpush1.bf16.msra.mxu0 0
    %329 = vmatprep.subr.bf16.mxu0 0
    %330 = vmatpush1.bf16.msra.mxu0 0
    %331 = vmatprep.subr.bf16.mxu0 0
    %332 = vmatpush1.bf16.msra.mxu0 0
    %333 = vmatprep.subr.bf16.mxu0 0
    %334 = vmatpush1.bf16.msra.mxu0 0
    %335 = vmatprep.mubr.bf16.mxu0 0
    %336 = vmatmul.mubr.bf16.gmra.mrb[0].mxu0 %v297
    %v337 = vpop.f32.mrb[0].mxu0
    %v338 = vadd.f32 0.0, %v337
    %v339 = vpop.f32.mrb[0].mxu0
    %v340 = vpop.f32.mrb[0].mxu0
    %v341 = vpop.f32.mrb[0].mxu0
    %342 = vdwg.mxu0
    %343 = vrot.lane.b32.xlu0 %v157, 96
    %v344 = vpop.permute.xlu0 %343
    %v346 = vsel %vm269, %v293, 0
    %v349 = vsel %vm299, %v344, 0
    %351 = vmatprep.subr.bf16.mxu0 0
    %352 = vmatpush1.bf16.msra.mxu0 %v349
    %353 = vmatprep.subr.bf16.mxu0 0
    %354 = vmatpush1.bf16.msra.mxu0 0
    %355 = vmatprep.subr.bf16.mxu0 0
    %356 = vmatpush1.bf16.msra.mxu0 0
    %357 = vmatprep.subr.bf16.mxu0 0
    %358 = vmatpush1.bf16.msra.mxu0 0
    %359 = vmatprep.subr.bf16.mxu0 0
    %360 = vmatpush1.bf16.msra.mxu0 0
    %361 = vmatprep.subr.bf16.mxu0 0
    %362 = vmatpush1.bf16.msra.mxu0 0
    %363 = vmatprep.subr.bf16.mxu0 0
    %364 = vmatpush1.bf16.msra.mxu0 0
    %365 = vmatprep.subr.bf16.mxu0 0
    %366 = vmatpush1.bf16.msra.mxu0 0
    %367 = vmatprep.subr.bf16.mxu0 0
    %368 = vmatpush1.bf16.msra.mxu0 0
    %369 = vmatprep.subr.bf16.mxu0 0
    %370 = vmatpush1.bf16.msra.mxu0 0
    %371 = vmatprep.subr.bf16.mxu0 0
    %372 = vmatpush1.bf16.msra.mxu0 0
    %373 = vmatprep.subr.bf16.mxu0 0
    %374 = vmatpush1.bf16.msra.mxu0 0
    %375 = vmatprep.subr.bf16.mxu0 0
    %376 = vmatpush1.bf16.msra.mxu0 0
    %377 = vmatprep.subr.bf16.mxu0 0
    %378 = vmatpush1.bf16.msra.mxu0 0
    %379 = vmatprep.subr.bf16.mxu0 0
    %380 = vmatpush1.bf16.msra.mxu0 0
    %381 = vmatprep.subr.bf16.mxu0 0
    %382 = vmatpush1.bf16.msra.mxu0 0
    %383 = vmatprep.mubr.bf16.mxu0 0
    %384 = vmatmul.mubr.bf16.gmra.mrb[0].mxu0 %v346
    %v385 = vpop.f32.mrb[0].mxu0
    %v386 = vadd.f32 0.0, %v385
    %v387 = vpop.f32.mrb[0].mxu0
    %v388 = vpop.f32.mrb[0].mxu0
    %v389 = vpop.f32.mrb[0].mxu0
    %390 = vdwg.mxu0
    %391 = vrot.lane.b32.xlu0 %v156, 80
    %v392 = vpop.permute.xlu0 %391
    %393 = vrot.lane.b32.xlu0 %v156, 64
    %v394 = vpop.permute.xlu0 %393
    %v396 = vsel %vm173, %v392, 0
    %v399 = vsel %vm173, %v394, 0
    %401 = vmatprep.subr.bf16.mxu0 0
    %402 = vmatpush1.bf16.xpose.msra.mxu0 %v399
    %403 = vmatprep.subr.bf16.mxu0 0
    %404 = vmatpush1.bf16.xpose.msra.mxu0 0
    %405 = vmatprep.subr.bf16.mxu0 0
    %406 = vmatpush1.bf16.xpose.msra.mxu0 0
    %407 = vmatprep.subr.bf16.mxu0 0
    %408 = vmatpush1.bf16.xpose.msra.mxu0 0
    %409 = vmatprep.subr.bf16.mxu0 0
    %410 = vmatpush1.bf16.xpose.msra.mxu0 0
    %411 = vmatprep.subr.bf16.mxu0 0
    %412 = vmatpush1.bf16.xpose.msra.mxu0 0
    %413 = vmatprep.subr.bf16.mxu0 0
    %414 = vmatpush1.bf16.xpose.msra.mxu0 0
    %415 = vmatprep.subr.bf16.mxu0 0
    %416 = vmatpush1.bf16.xpose.msra.mxu0 0
    %417 = vmatprep.subr.bf16.mxu0 0
    %418 = vmatpush1.bf16.xpose.msra.mxu0 0
    %419 = vmatprep.subr.bf16.mxu0 0
    %420 = vmatpush1.bf16.xpose.msra.mxu0 0
    %421 = vmatprep.subr.bf16.mxu0 0
    %422 = vmatpush1.bf16.xpose.msra.mxu0 0
    %423 = vmatprep.subr.bf16.mxu0 0
    %424 = vmatpush1.bf16.xpose.msra.mxu0 0
    %425 = vmatprep.subr.bf16.mxu0 0
    %426 = vmatpush1.bf16.xpose.msra.mxu0 0
    %427 = vmatprep.subr.bf16.mxu0 0
    %428 = vmatpush1.bf16.xpose.msra.mxu0 0
    %429 = vmatprep.subr.bf16.mxu0 0
    %430 = vmatpush1.bf16.xpose.msra.mxu0 0
    %431 = vmatprep.subr.bf16.mxu0 0
    %432 = vmatpush1.bf16.xpose.msra.mxu0 0
    %433 = vmatprep.mubr.bf16.mxu0 0
    %434 = vmatmul.mubr.bf16.gmra.mrb[0].mxu0 %v396
    %v435 = vpop.f32.mrb[0].mxu0
    %v436 = vadd.f32 %v163, %v435
    %v437 = vpop.f32.mrb[0].mxu0
    %v438 = vpop.f32.mrb[0].mxu0
    %v439 = vpop.f32.mrb[0].mxu0
    %440 = vdwg.mxu0
    %441 = vrot.lane.b32.xlu0 %v157, 80
    %v442 = vpop.permute.xlu0 %441
    %443 = vrot.lane.b32.xlu0 %v157, 64
    %v444 = vpop.permute.xlu0 %443
    %v446 = vsel %vm173, %v442, 0
    %v449 = vsel %vm173, %v444, 0
    %451 = vmatprep.subr.bf16.mxu0 0
    %452 = vmatpush1.bf16.xpose.msra.mxu0 %v449
    %453 = vmatprep.subr.bf16.mxu0 0
    %454 = vmatpush1.bf16.xpose.msra.mxu0 0
    %455 = vmatprep.subr.bf16.mxu0 0
    %456 = vmatpush1.bf16.xpose.msra.mxu0 0
    %457 = vmatprep.subr.bf16.mxu0 0
    %458 = vmatpush1.bf16.xpose.msra.mxu0 0
    %459 = vmatprep.subr.bf16.mxu0 0
    %460 = vmatpush1.bf16.xpose.msra.mxu0 0
    %461 = vmatprep.subr.bf16.mxu0 0
    %462 = vmatpush1.bf16.xpose.msra.mxu0 0
    %463 = vmatprep.subr.bf16.mxu0 0
    %464 = vmatpush1.bf16.xpose.msra.mxu0 0
    %465 = vmatprep.subr.bf16.mxu0 0
    %466 = vmatpush1.bf16.xpose.msra.mxu0 0
    %467 = vmatprep.subr.bf16.mxu0 0
    %468 = vmatpush1.bf16.xpose.msra.mxu0 0
    %469 = vmatprep.subr.bf16.mxu0 0
    %470 = vmatpush1.bf16.xpose.msra.mxu0 0
    %471 = vmatprep.subr.bf16.mxu0 0
    %472 = vmatpush1.bf16.xpose.msra.mxu0 0
    %473 = vmatprep.subr.bf16.mxu0 0
    %474 = vmatpush1.bf16.xpose.msra.mxu0 0
    %475 = vmatprep.subr.bf16.mxu0 0
    %476 = vmatpush1.bf16.xpose.msra.mxu0 0
    %477 = vmatprep.subr.bf16.mxu0 0
    %478 = vmatpush1.bf16.xpose.msra.mxu0 0
    %479 = vmatprep.subr.bf16.mxu0 0
    %480 = vmatpush1.bf16.xpose.msra.mxu0 0
    %481 = vmatprep.subr.bf16.mxu0 0
    %482 = vmatpush1.bf16.xpose.msra.mxu0 0
    %483 = vmatprep.mubr.bf16.mxu0 0
    %484 = vmatmul.mubr.bf16.gmra.mrb[0].mxu0 %v446
    %v485 = vpop.f32.mrb[0].mxu0
    %v486 = vadd.f32 %v167, %v485
    %v487 = vpop.f32.mrb[0].mxu0
    %v488 = vpop.f32.mrb[0].mxu0
    %v489 = vpop.f32.mrb[0].mxu0
    %490 = vdwg.mxu0
    %v491 = vsel %vm269, %v436, -inf
    %492 = vmax.xlane.f32.xlu0 %v491
    %v493 = vpop.xlane.xlu0 %492
    %v494 = vsel %vm269, %v486, -inf
    %495 = vmax.xlane.f32.xlu0 %v494
    %v496 = vpop.xlane.xlu0 %495
    %v497 = vsub.f32 %v436, %v493
    %v498 = vsub.f32 %v486, %v496
    %v499 = vmul.f32 %v497, 1.442695
    %v500 = vpow.pop %v499
    %v501 = vmul.f32 %v498, 1.442695
    %v502 = vpow.pop %v501
    %v503 = vsel %vm269, %v500, 0.0
    %504 = vadd.xlane.f32.xlu0 %v503
    %v505 = vpop.xlane.xlu0 %504
    %v506 = vsel %vm269, %v502, 0.0
    %507 = vadd.xlane.f32.xlu0 %v506
    %v508 = vpop.xlane.xlu0 %507
    %v509 = vrcp.pop %v505
    %v510 = vrcp.pop %v508
    %v511 = vmul.f32 %v500, %v509
    %v512 = vmul.f32 %v502, %v510
    %v513 = vpack.c.bf16 %v511, %v511
    %v514 = vpack.c.bf16 %v512, %v512
    %515 = vrot.lane.b32.xlu0 %v156, 48
    %v516 = vpop.permute.xlu0 %515
    %v518 = vsel %vm269, %v513, 0
    %v521 = vsel %vm299, %v516, 0
    %523 = vmatprep.subr.bf16.mxu0 0
    %524 = vmatpush1.bf16.msra.mxu0 %v521
    %525 = vmatprep.subr.bf16.mxu0 0
    %526 = vmatpush1.bf16.msra.mxu0 0
    %527 = vmatprep.subr.bf16.mxu0 0
    %528 = vmatpush1.bf16.msra.mxu0 0
    %529 = vmatprep.subr.bf16.mxu0 0
    %530 = vmatpush1.bf16.msra.mxu0 0
    %531 = vmatprep.subr.bf16.mxu0 0
    %532 = vmatpush1.bf16.msra.mxu0 0
    %533 = vmatprep.subr.bf16.mxu0 0
    %534 = vmatpush1.bf16.msra.mxu0 0
    %535 = vmatprep.subr.bf16.mxu0 0
    %536 = vmatpush1.bf16.msra.mxu0 0
    %537 = vmatprep.subr.bf16.mxu0 0
    %538 = vmatpush1.bf16.msra.mxu0 0
    %539 = vmatprep.subr.bf16.mxu0 0
    %540 = vmatpush1.bf16.msra.mxu0 0
    %541 = vmatprep.subr.bf16.mxu0 0
    %542 = vmatpush1.bf16.msra.mxu0 0
    %543 = vmatprep.subr.bf16.mxu0 0
    %544 = vmatpush1.bf16.msra.mxu0 0
    %545 = vmatprep.subr.bf16.mxu0 0
    %546 = vmatpush1.bf16.msra.mxu0 0
    %547 = vmatprep.subr.bf16.mxu0 0
    %548 = vmatpush1.bf16.msra.mxu0 0
    %549 = vmatprep.subr.bf16.mxu0 0
    %550 = vmatpush1.bf16.msra.mxu0 0
    %551 = vmatprep.subr.bf16.mxu0 0
    %552 = vmatpush1.bf16.msra.mxu0 0
    %553 = vmatprep.subr.bf16.mxu0 0
    %554 = vmatpush1.bf16.msra.mxu0 0
    %555 = vmatprep.mubr.bf16.mxu0 0
    %556 = vmatmul.mubr.bf16.gmra.mrb[0].mxu0 %v518
    %v557 = vpop.f32.mrb[0].mxu0
    %v558 = vadd.f32 0.0, %v557
    %v559 = vpop.f32.mrb[0].mxu0
    %v560 = vpop.f32.mrb[0].mxu0
    %v561 = vpop.f32.mrb[0].mxu0
    %562 = vdwg.mxu0
    %563 = vrot.lane.b32.xlu0 %v157, 48
    %v564 = vpop.permute.xlu0 %563
    %v566 = vsel %vm269, %v514, 0
    %v569 = vsel %vm299, %v564, 0
    %571 = vmatprep.subr.bf16.mxu0 0
    %572 = vmatpush1.bf16.msra.mxu0 %v569
    %573 = vmatprep.subr.bf16.mxu0 0
    %574 = vmatpush1.bf16.msra.mxu0 0
    %575 = vmatprep.subr.bf16.mxu0 0
    %576 = vmatpush1.bf16.msra.mxu0 0
    %577 = vmatprep.subr.bf16.mxu0 0
    %578 = vmatpush1.bf16.msra.mxu0 0
    %579 = vmatprep.subr.bf16.mxu0 0
    %580 = vmatpush1.bf16.msra.mxu0 0
    %581 = vmatprep.subr.bf16.mxu0 0
    %582 = vmatpush1.bf16.msra.mxu0 0
    %583 = vmatprep.subr.bf16.mxu0 0
    %584 = vmatpush1.bf16.msra.mxu0 0
    %585 = vmatprep.subr.bf16.mxu0 0
    %586 = vmatpush1.bf16.msra.mxu0 0
    %587 = vmatprep.subr.bf16.mxu0 0
    %588 = vmatpush1.bf16.msra.mxu0 0
    %589 = vmatprep.subr.bf16.mxu0 0
    %590 = vmatpush1.bf16.msra.mxu0 0
    %591 = vmatprep.subr.bf16.mxu0 0
    %592 = vmatpush1.bf16.msra.mxu0 0
    %593 = vmatprep.subr.bf16.mxu0 0
    %594 = vmatpush1.bf16.msra.mxu0 0
    %595 = vmatprep.subr.bf16.mxu0 0
    %596 = vmatpush1.bf16.msra.mxu0 0
    %597 = vmatprep.subr.bf16.mxu0 0
    %598 = vmatpush1.bf16.msra.mxu0 0
    %599 = vmatprep.subr.bf16.mxu0 0
    %600 = vmatpush1.bf16.msra.mxu0 0
    %601 = vmatprep.subr.bf16.mxu0 0
    %602 = vmatpush1.bf16.msra.mxu0 0
    %603 = vmatprep.mubr.bf16.mxu0 0
    %604 = vmatmul.mubr.bf16.gmra.mrb[0].mxu0 %v566
    %v605 = vpop.f32.mrb[0].mxu0
    %v606 = vadd.f32 0.0, %v605
    %v607 = vpop.f32.mrb[0].mxu0
    %v608 = vpop.f32.mrb[0].mxu0
    %v609 = vpop.f32.mrb[0].mxu0
    %610 = vdwg.mxu0
    %613 = vrot.lane.b32.xlu0 %v558, 16
    %v614 = vpop.permute.xlu0 %613
    %615 = vrot.lane.b32.xlu0 %v606, 16
    %v616 = vpop.permute.xlu0 %615
    %v619 = vsel %vm173, %v338, %v614
    %v620 = vsel %vm173, %v386, %v616
    %v621 = vpack.c.bf16 %v620, %v619
    %v622 = vld [vmem:[%s5] sm:$0xf]
    %v623 = vld [vmem:[%s5 + $0x4] sm:$0xf]
    %v624 = vld [vmem:[%s5 + $0x8] sm:$0xf]
    %v625 = vld [vmem:[%s5 + $0xc] sm:$0xf]
    %v626 = vlaneseq
    %v627 = vshrl.u32 %v626, 7
    %v628 = vsub.s32 1, %v627
    %v629 = vrot.slane %v90, %v628
    %v634 = vunpack.c.l.b16 %v622
    %v635 = vunpack.c.l.b16 %v623
    %v636 = vunpack.c.l.b16 %v624
    %v637 = vunpack.c.l.b16 %v625
    %v638 = vpack.c.b16 %v635, %v634
    %v639 = vpack.c.b16 %v637, %v636
    %v643 = vsel %vm48, %v621, 0
    %645 = vmatprep.subr.bf16.mxu0 0
    %646 = vmatpush1.bf16.msra.mxu0 %v638
    %647 = vmatprep.subr.bf16.mxu0 0
    %648 = vmatpush1.bf16.msra.mxu0 %v639
    %649 = vmatprep.subr.bf16.mxu0 0
    %650 = vmatpush1.bf16.msra.mxu0 0
    %651 = vmatprep.subr.bf16.mxu0 0
    %652 = vmatpush1.bf16.msra.mxu0 0
    %653 = vmatprep.subr.bf16.mxu0 0
    %654 = vmatpush1.bf16.msra.mxu0 0
    %655 = vmatprep.subr.bf16.mxu0 0
    %656 = vmatpush1.bf16.msra.mxu0 0
    %657 = vmatprep.subr.bf16.mxu0 0
    %658 = vmatpush1.bf16.msra.mxu0 0
    %659 = vmatprep.subr.bf16.mxu0 0
    %660 = vmatpush1.bf16.msra.mxu0 0
    %661 = vmatprep.subr.bf16.mxu0 0
    %662 = vmatpush1.bf16.msra.mxu0 0
    %663 = vmatprep.subr.bf16.mxu0 0
    %664 = vmatpush1.bf16.msra.mxu0 0
    %665 = vmatprep.subr.bf16.mxu0 0
    %666 = vmatpush1.bf16.msra.mxu0 0
    %667 = vmatprep.subr.bf16.mxu0 0
    %668 = vmatpush1.bf16.msra.mxu0 0
    %669 = vmatprep.subr.bf16.mxu0 0
    %670 = vmatpush1.bf16.msra.mxu0 0
    %671 = vmatprep.subr.bf16.mxu0 0
    %672 = vmatpush1.bf16.msra.mxu0 0
    %673 = vmatprep.subr.bf16.mxu0 0
    %674 = vmatpush1.bf16.msra.mxu0 0
    %675 = vmatprep.subr.bf16.mxu0 0
    %676 = vmatpush1.bf16.msra.mxu0 0
    %677 = vmatprep.mubr.bf16.mxu0 0
    %678 = vmatmul.mubr.bf16.gmra.mrb[0].mxu0 %v643
    %v679 = vpop.f32.mrb[0].mxu0
    %v680 = vadd.f32 %v629, %v679
    %v681 = vpop.f32.mrb[0].mxu0
    %v682 = vpop.f32.mrb[0].mxu0
    %v683 = vadd.f32 %v629, %v682
    %v684 = vpop.f32.mrb[0].mxu0
    %685 = vdwg.mxu0
    %v686 = vadd.f32 %v86, %v680
    %v687 = vadd.f32 %v87, %v683
    %v688 = vsel %vm48, %v686, 0.0
    %689 = vadd.xlane.f32.xlu0 %v688
    %v690 = vpop.xlane.xlu0 %689
    %v691 = vsel %vm48, %v687, 0.0
    %692 = vadd.xlane.f32.xlu0 %v691
    %v693 = vpop.xlane.xlu0 %692
    %v694 = vmul.f32 %v690, %v55
    %v695 = vmul.f32 %v693, %v55
    %v696 = vsub.f32 %v686, %v694
    %v697 = vsub.f32 %v687, %v695
    %v698 = vmul.f32 %v696, %v696
    %v699 = vmul.f32 %v697, %v697
    %v700 = vsel %vm48, %v698, 0.0
    %701 = vadd.xlane.f32.xlu0 %v700
    %v702 = vpop.xlane.xlu0 %701
    %v703 = vsel %vm48, %v699, 0.0
    %704 = vadd.xlane.f32.xlu0 %v703
    %v705 = vpop.xlane.xlu0 %704
    %v706 = vmul.f32 %v702, %v55
    %v707 = vmul.f32 %v705, %v55
    %v708 = vadd.f32 %v706, 1e-12
    %v709 = vadd.f32 %v707, 1e-12
    %v710 = vrsqrt.pop %v708
    %v711 = vrsqrt.pop %v709
    %v712 = vmul.f32 %v696, %v710
    %v713 = vmul.f32 %v697, %v711
    %v714 = vlaneseq
    %v715 = vshrl.u32 %v714, 7
    %v716 = vsub.s32 2, %v715
    %v717 = vrot.slane %v90, %v716
    %v718 = vmul.f32 %v712, %v717
    %v719 = vmul.f32 %v713, %v717
    %v720 = vlaneseq
    %v721 = vshrl.u32 %v720, 7
    %v722 = vsub.s32 3, %v721
    %v723 = vrot.slane %v90, %v722
    %v724 = vadd.f32 %v718, %v723
    %v725 = vadd.f32 %v719, %v723
    %v726 = vpack.c.bf16 %v725, %v724
    %v727 = vld [vmem:[%s6] sm:$0xf]
    %v728 = vld [vmem:[%s6 + $0x4] sm:$0xf]
    %v729 = vld [vmem:[%s6 + $0x8] sm:$0xf]
    %v730 = vld [vmem:[%s6 + $0xc] sm:$0xf]
    %v731 = vlaneseq
    %v732 = vshrl.u32 %v731, 7
    %v733 = vsub.s32 4, %v732
    %v734 = vrot.slane %v90, %v733
    %v739 = vunpack.c.l.b16 %v727
    %v740 = vunpack.c.l.b16 %v728
    %v741 = vunpack.c.l.b16 %v729
    %v742 = vunpack.c.l.b16 %v730
    %v743 = vpack.c.b16 %v740, %v739
    %v744 = vpack.c.b16 %v742, %v741
    %v748 = vsel %vm48, %v726, 0
    %750 = vmatprep.subr.bf16.mxu0 0
    %751 = vmatpush1.bf16.msra.mxu0 %v743
    %752 = vmatprep.subr.bf16.mxu0 0
    %753 = vmatpush1.bf16.msra.mxu0 %v744
    %754 = vmatprep.subr.bf16.mxu0 0
    %755 = vmatpush1.bf16.msra.mxu0 0
    %756 = vmatprep.subr.bf16.mxu0 0
    %757 = vmatpush1.bf16.msra.mxu0 0
    %758 = vmatprep.subr.bf16.mxu0 0
    %759 = vmatpush1.bf16.msra.mxu0 0
    %760 = vmatprep.subr.bf16.mxu0 0
    %761 = vmatpush1.bf16.msra.mxu0 0
    %762 = vmatprep.subr.bf16.mxu0 0
    %763 = vmatpush1.bf16.msra.mxu0 0
    %764 = vmatprep.subr.bf16.mxu0 0
    %765 = vmatpush1.bf16.msra.mxu0 0
    %766 = vmatprep.subr.bf16.mxu0 0
    %767 = vmatpush1.bf16.msra.mxu0 0
    %768 = vmatprep.subr.bf16.mxu0 0
    %769 = vmatpush1.bf16.msra.mxu0 0
    %770 = vmatprep.subr.bf16.mxu0 0
    %771 = vmatpush1.bf16.msra.mxu0 0
    %772 = vmatprep.subr.bf16.mxu0 0
    %773 = vmatpush1.bf16.msra.mxu0 0
    %774 = vmatprep.subr.bf16.mxu0 0
    %775 = vmatpush1.bf16.msra.mxu0 0
    %776 = vmatprep.subr.bf16.mxu0 0
    %777 = vmatpush1.bf16.msra.mxu0 0
    %778 = vmatprep.subr.bf16.mxu0 0
    %779 = vmatpush1.bf16.msra.mxu0 0
    %780 = vmatprep.subr.bf16.mxu0 0
    %781 = vmatpush1.bf16.msra.mxu0 0
    %782 = vmatprep.mubr.bf16.mxu0 0
    %783 = vmatmul.mubr.bf16.gmra.mrb[0].mxu0 %v748
    %v784 = vpop.f32.mrb[0].mxu0
    %v785 = vadd.f32 %v734, %v784
    %v786 = vpop.f32.mrb[0].mxu0
    %v787 = vpop.f32.mrb[0].mxu0
    %v788 = vadd.f32 %v734, %v787
    %v789 = vpop.f32.mrb[0].mxu0
    %790 = vdwg.mxu0
    %v791 = vmul.f32 %v785, 0.5
    %v792 = vmul.f32 %v788, 0.5
    %v793 = vmul.f32 %v785, 0.044715
    %v794 = vmul.f32 %v788, 0.044715
    %v795 = vmul.f32 %v793, %v785
    %v796 = vmul.f32 %v794, %v788
    %v797 = vmul.f32 %v795, %v785
    %v798 = vmul.f32 %v796, %v788
    %v799 = vadd.f32 %v785, %v797
    %v800 = vadd.f32 %v788, %v798
    %v801 = vmul.f32 %v799, 0.7978846
    %v802 = vmul.f32 %v800, 0.7978846
    %v803 = vtanh.pop %v801
    %v804 = vtanh.pop %v802
    %v805 = vadd.f32 %v803, 1.0
    %v806 = vadd.f32 %v804, 1.0
    %v807 = vmul.f32 %v791, %v805
    %v808 = vmul.f32 %v792, %v806
    %v809 = vpack.c.bf16 %v808, %v807
    %v810 = vld [vmem:[%s7] sm:$0xf]
    %v811 = vld [vmem:[%s7 + $0x4] sm:$0xf]
    %v812 = vld [vmem:[%s7 + $0x8] sm:$0xf]
    %v813 = vld [vmem:[%s7 + $0xc] sm:$0xf]
    %v814 = vld [vmem:[%s7 + $0x10] sm:$0xf]
    %v815 = vld [vmem:[%s7 + $0x14] sm:$0xf]
    %v816 = vld [vmem:[%s7 + $0x18] sm:$0xf]
    %v817 = vld [vmem:[%s7 + $0x1c] sm:$0xf]
    %v818 = vlaneseq
    %v819 = vshrl.u32 %v818, 7
    %v820 = vsub.s32 5, %v819
    %v821 = vrot.slane %v90, %v820
    %v830 = vunpack.c.l.b16 %v810
    %v831 = vunpack.c.l.b16 %v811
    %v832 = vunpack.c.l.b16 %v812
    %v833 = vunpack.c.l.b16 %v813
    %v834 = vunpack.c.l.b16 %v814
    %v835 = vunpack.c.l.b16 %v815
    %v836 = vunpack.c.l.b16 %v816
    %v837 = vunpack.c.l.b16 %v817
    %v838 = vpack.c.b16 %v831, %v830
    %v839 = vpack.c.b16 %v833, %v832
    %v840 = vpack.c.b16 %v835, %v834
    %v841 = vpack.c.b16 %v837, %v836
    %vm846 = vcmask 523264
    %v848 = vsel %vm846, %v809, 0
    %850 = vmatprep.subr.bf16.mxu0 0
    %851 = vmatpush1.bf16.msra.mxu0 %v838
    %852 = vmatprep.subr.bf16.mxu0 0
    %853 = vmatpush1.bf16.msra.mxu0 %v839
    %854 = vmatprep.subr.bf16.mxu0 0
    %855 = vmatpush1.bf16.msra.mxu0 %v840
    %856 = vmatprep.subr.bf16.mxu0 0
    %857 = vmatpush1.bf16.msra.mxu0 %v841
    %858 = vmatprep.subr.bf16.mxu0 0
    %859 = vmatpush1.bf16.msra.mxu0 0
    %860 = vmatprep.subr.bf16.mxu0 0
    %861 = vmatpush1.bf16.msra.mxu0 0
    %862 = vmatprep.subr.bf16.mxu0 0
    %863 = vmatpush1.bf16.msra.mxu0 0
    %864 = vmatprep.subr.bf16.mxu0 0
    %865 = vmatpush1.bf16.msra.mxu0 0
    %866 = vmatprep.subr.bf16.mxu0 0
    %867 = vmatpush1.bf16.msra.mxu0 0
    %868 = vmatprep.subr.bf16.mxu0 0
    %869 = vmatpush1.bf16.msra.mxu0 0
    %870 = vmatprep.subr.bf16.mxu0 0
    %871 = vmatpush1.bf16.msra.mxu0 0
    %872 = vmatprep.subr.bf16.mxu0 0
    %873 = vmatpush1.bf16.msra.mxu0 0
    %874 = vmatprep.subr.bf16.mxu0 0
    %875 = vmatpush1.bf16.msra.mxu0 0
    %876 = vmatprep.subr.bf16.mxu0 0
    %877 = vmatpush1.bf16.msra.mxu0 0
    %878 = vmatprep.subr.bf16.mxu0 0
    %879 = vmatpush1.bf16.msra.mxu0 0
    %880 = vmatprep.subr.bf16.mxu0 0
    %881 = vmatpush1.bf16.msra.mxu0 0
    %882 = vmatprep.mubr.bf16.mxu0 0
    %883 = vmatmul.mubr.bf16.gmra.mrb[0].mxu0 %v848
    %v884 = vpop.f32.mrb[0].mxu0
    %v885 = vadd.f32 %v821, %v884
    %v886 = vpop.f32.mrb[0].mxu0
    %v887 = vpop.f32.mrb[0].mxu0
    %v888 = vadd.f32 %v821, %v887
    %v889 = vpop.f32.mrb[0].mxu0
    %890 = vdwg.mxu0
    %v891 = vadd.f32 %v724, %v885
    %v892 = vadd.f32 %v725, %v888
    %v893 = vsel %vm48, %v891, 0.0
    %894 = vadd.xlane.f32.xlu0 %v893
    %v895 = vpop.xlane.xlu0 %894
    %v896 = vsel %vm48, %v892, 0.0
    %897 = vadd.xlane.f32.xlu0 %v896
    %v898 = vpop.xlane.xlu0 %897
    %v899 = vmul.f32 %v895, %v55
    %v900 = vmul.f32 %v898, %v55
    %v901 = vsub.f32 %v891, %v899
    %v902 = vsub.f32 %v892, %v900
    %v903 = vmul.f32 %v901, %v901
    %v904 = vmul.f32 %v902, %v902
    %v905 = vsel %vm48, %v903, 0.0
    %906 = vadd.xlane.f32.xlu0 %v905
    %v907 = vpop.xlane.xlu0 %906
    %v908 = vsel %vm48, %v904, 0.0
    %909 = vadd.xlane.f32.xlu0 %v908
    %v910 = vpop.xlane.xlu0 %909
    %v911 = vmul.f32 %v907, %v55
    %v912 = vmul.f32 %v910, %v55
    %v913 = vadd.f32 %v911, 1e-12
    %v914 = vadd.f32 %v912, 1e-12
    %v915 = vrsqrt.pop %v913
    %v916 = vrsqrt.pop %v914
    %v917 = vmul.f32 %v901, %v915
    %v918 = vmul.f32 %v902, %v916
    %v919 = vlaneseq
    %v920 = vshrl.u32 %v919, 7
    %v921 = vsub.s32 6, %v920
    %v922 = vrot.slane %v90, %v921
    %v923 = vmul.f32 %v917, %v922
    %v924 = vmul.f32 %v918, %v922
    %v925 = vlaneseq
    %v926 = vshrl.u32 %v925, 7
    %v927 = vsub.s32 7, %v926
    %v928 = vrot.slane %v90, %v927
    %v929 = vadd.f32 %v923, %v928
    %v930 = vadd.f32 %v924, %v928
    %s931 = scalar_lea.vmem %s8, 8
    %v932 = vld [vmem:[%s931] sm:$0xff]
    %v933 = vpack.c.bf16 %v930, %v929
    %s934 = scalar_lea.vmem %s4, 16
    %v935 = vld [vmem:[%s934] sm:$0xf]
    %v936 = vld [vmem:[%s934 + $0x4] sm:$0xf]
    %v937 = vld [vmem:[%s934 + $0x8] sm:$0xf]
    %v938 = vld [vmem:[%s934 + $0xc] sm:$0xf]
    %v939 = vlaneseq
    %v940 = vshrl.u32 %v939, 7
    %v941 = vsub.s32 0, %v940
    %v942 = vrot.slane %v932, %v941
    %v947 = vunpack.c.l.b16 %v935
    %v948 = vunpack.c.l.b16 %v936
    %v949 = vunpack.c.l.b16 %v937
    %v950 = vunpack.c.l.b16 %v938
    %v951 = vpack.c.b16 %v948, %v947
    %v952 = vpack.c.b16 %v950, %v949
    %v956 = vsel %vm48, %v933, 0
    %958 = vmatprep.subr.bf16.mxu0 0
    %959 = vmatpush1.bf16.msra.mxu0 %v951
    %960 = vmatprep.subr.bf16.mxu0 0
    %961 = vmatpush1.bf16.msra.mxu0 %v952
    %962 = vmatprep.subr.bf16.mxu0 0
    %963 = vmatpush1.bf16.msra.mxu0 0
    %964 = vmatprep.subr.bf16.mxu0 0
    %965 = vmatpush1.bf16.msra.mxu0 0
    %966 = vmatprep.subr.bf16.mxu0 0
    %967 = vmatpush1.bf16.msra.mxu0 0
    %968 = vmatprep.subr.bf16.mxu0 0
    %969 = vmatpush1.bf16.msra.mxu0 0
    %970 = vmatprep.subr.bf16.mxu0 0
    %971 = vmatpush1.bf16.msra.mxu0 0
    %972 = vmatprep.subr.bf16.mxu0 0
    %973 = vmatpush1.bf16.msra.mxu0 0
    %974 = vmatprep.subr.bf16.mxu0 0
    %975 = vmatpush1.bf16.msra.mxu0 0
    %976 = vmatprep.subr.bf16.mxu0 0
    %977 = vmatpush1.bf16.msra.mxu0 0
    %978 = vmatprep.subr.bf16.mxu0 0
    %979 = vmatpush1.bf16.msra.mxu0 0
    %980 = vmatprep.subr.bf16.mxu0 0
    %981 = vmatpush1.bf16.msra.mxu0 0
    %982 = vmatprep.subr.bf16.mxu0 0
    %983 = vmatpush1.bf16.msra.mxu0 0
    %984 = vmatprep.subr.bf16.mxu0 0
    %985 = vmatpush1.bf16.msra.mxu0 0
    %986 = vmatprep.subr.bf16.mxu0 0
    %987 = vmatpush1.bf16.msra.mxu0 0
    %988 = vmatprep.subr.bf16.mxu0 0
    %989 = vmatpush1.bf16.msra.mxu0 0
    %990 = vmatprep.mubr.bf16.mxu0 0
    %991 = vmatmul.mubr.bf16.gmra.mrb[0].mxu0 %v956
    %v992 = vpop.f32.mrb[0].mxu0
    %v993 = vadd.f32 %v942, %v992
    %v994 = vpop.f32.mrb[0].mxu0
    %v995 = vpop.f32.mrb[0].mxu0
    %v996 = vadd.f32 %v942, %v995
    %v997 = vpop.f32.mrb[0].mxu0
    %998 = vdwg.mxu0
    %v999 = vpack.c.bf16 %v993, %v993
    %v1000 = vpack.c.bf16 %v996, %v996
    %1002 = vrot.lane.b32.xlu0 %v999, 112
    %v1003 = vpop.permute.xlu0 %1002
    %v1005 = vsel %vm173, %v999, 0
    %v1008 = vsel %vm173, %v1003, 0
    %1010 = vmatprep.subr.bf16.mxu0 0
    %1011 = vmatpush1.bf16.xpose.msra.mxu0 %v1008
    %1012 = vmatprep.subr.bf16.mxu0 0
    %1013 = vmatpush1.bf16.xpose.msra.mxu0 0
    %1014 = vmatprep.subr.bf16.mxu0 0
    %1015 = vmatpush1.bf16.xpose.msra.mxu0 0
    %1016 = vmatprep.subr.bf16.mxu0 0
    %1017 = vmatpush1.bf16.xpose.msra.mxu0 0
    %1018 = vmatprep.subr.bf16.mxu0 0
    %1019 = vmatpush1.bf16.xpose.msra.mxu0 0
    %1020 = vmatprep.subr.bf16.mxu0 0
    %1021 = vmatpush1.bf16.xpose.msra.mxu0 0
    %1022 = vmatprep.subr.bf16.mxu0 0
    %1023 = vmatpush1.bf16.xpose.msra.mxu0 0
    %1024 = vmatprep.subr.bf16.mxu0 0
    %1025 = vmatpush1.bf16.xpose.msra.mxu0 0
    %1026 = vmatprep.subr.bf16.mxu0 0
    %1027 = vmatpush1.bf16.xpose.msra.mxu0 0
    %1028 = vmatprep.subr.bf16.mxu0 0
    %1029 = vmatpush1.bf16.xpose.msra.mxu0 0
    %1030 = vmatprep.subr.bf16.mxu0 0
    %1031 = vmatpush1.bf16.xpose.msra.mxu0 0
    %1032 = vmatprep.subr.bf16.mxu0 0
    %1033 = vmatpush1.bf16.xpose.msra.mxu0 0
    %1034 = vmatprep.subr.bf16.mxu0 0
    %1035 = vmatpush1.bf16.xpose.msra.mxu0 0
    %1036 = vmatprep.subr.bf16.mxu0 0
    %1037 = vmatpush1.bf16.xpose.msra.mxu0 0
    %1038 = vmatprep.subr.bf16.mxu0 0
    %1039 = vmatpush1.bf16.xpose.msra.mxu0 0
    %1040 = vmatprep.subr.bf16.mxu0 0
    %1041 = vmatpush1.bf16.xpose.msra.mxu0 0
    %1042 = vmatprep.mubr.bf16.mxu0 0
    %1043 = vmatmul.mubr.bf16.gmra.mrb[0].mxu0 %v1005
    %v1044 = vpop.f32.mrb[0].mxu0
    %v1045 = vadd.f32 %v163, %v1044
    %v1046 = vpop.f32.mrb[0].mxu0
    %v1047 = vpop.f32.mrb[0].mxu0
    %v1048 = vpop.f32.mrb[0].mxu0
    %1049 = vdwg.mxu0
    %1051 = vrot.lane.b32.xlu0 %v1000, 112
    %v1052 = vpop.permute.xlu0 %1051
    %v1054 = vsel %vm173, %v1000, 0
    %v1057 = vsel %vm173, %v1052, 0
    %1059 = vmatprep.subr.bf16.mxu0 0
    %1060 = vmatpush1.bf16.xpose.msra.mxu0 %v1057
    %1061 = vmatprep.subr.bf16.mxu0 0
    %1062 = vmatpush1.bf16.xpose.msra.mxu0 0
    %1063 = vmatprep.subr.bf16.mxu0 0
    %1064 = vmatpush1.bf16.xpose.msra.mxu0 0
    %1065 = vmatprep.subr.bf16.mxu0 0
    %1066 = vmatpush1.bf16.xpose.msra.mxu0 0
    %1067 = vmatprep.subr.bf16.mxu0 0
    %1068 = vmatpush1.bf16.xpose.msra.mxu0 0
    %1069 = vmatprep.subr.bf16.mxu0 0
    %1070 = vmatpush1.bf16.xpose.msra.mxu0 0
    %1071 = vmatprep.subr.bf16.mxu0 0
    %1072 = vmatpush1.bf16.xpose.msra.mxu0 0
    %1073 = vmatprep.subr.bf16.mxu0 0
    %1074 = vmatpush1.bf16.xpose.msra.mxu0 0
    %1075 = vmatprep.subr.bf16.mxu0 0
    %1076 = vmatpush1.bf16.xpose.msra.mxu0 0
    %1077 = vmatprep.subr.bf16.mxu0 0
    %1078 = vmatpush1.bf16.xpose.msra.mxu0 0
    %1079 = vmatprep.subr.bf16.mxu0 0
    %1080 = vmatpush1.bf16.xpose.msra.mxu0 0
    %1081 = vmatprep.subr.bf16.mxu0 0
    %1082 = vmatpush1.bf16.xpose.msra.mxu0 0
    %1083 = vmatprep.subr.bf16.mxu0 0
    %1084 = vmatpush1.bf16.xpose.msra.mxu0 0
    %1085 = vmatprep.subr.bf16.mxu0 0
    %1086 = vmatpush1.bf16.xpose.msra.mxu0 0
    %1087 = vmatprep.subr.bf16.mxu0 0
    %1088 = vmatpush1.bf16.xpose.msra.mxu0 0
    %1089 = vmatprep.subr.bf16.mxu0 0
    %1090 = vmatpush1.bf16.xpose.msra.mxu0 0
    %1091 = vmatprep.mubr.bf16.mxu0 0
    %1092 = vmatmul.mubr.bf16.gmra.mrb[0].mxu0 %v1054
    %v1093 = vpop.f32.mrb[0].mxu0
    %v1094 = vadd.f32 %v167, %v1093
    %v1095 = vpop.f32.mrb[0].mxu0
    %v1096 = vpop.f32.mrb[0].mxu0
    %v1097 = vpop.f32.mrb[0].mxu0
    %1098 = vdwg.mxu0
    %v1099 = vsel %vm269, %v1045, -inf
    %1100 = vmax.xlane.f32.xlu0 %v1099
    %v1101 = vpop.xlane.xlu0 %1100
    %v1102 = vsel %vm269, %v1094, -inf
    %1103 = vmax.xlane.f32.xlu0 %v1102
    %v1104 = vpop.xlane.xlu0 %1103
    %v1105 = vsub.f32 %v1045, %v1101
    %v1106 = vsub.f32 %v1094, %v1104
    %v1107 = vmul.f32 %v1105, 1.442695
    %v1108 = vpow.pop %v1107
    %v1109 = vmul.f32 %v1106, 1.442695
    %v1110 = vpow.pop %v1109
    %v1111 = vsel %vm269, %v1108, 0.0
    %1112 = vadd.xlane.f32.xlu0 %v1111
    %v1113 = vpop.xlane.xlu0 %1112
    %v1114 = vsel %vm269, %v1110, 0.0
    %1115 = vadd.xlane.f32.xlu0 %v1114
    %v1116 = vpop.xlane.xlu0 %1115
    %v1117 = vrcp.pop %v1113
    %v1118 = vrcp.pop %v1116
    %v1119 = vmul.f32 %v1108, %v1117
    %v1120 = vmul.f32 %v1110, %v1118
    %v1121 = vpack.c.bf16 %v1119, %v1119
    %v1122 = vpack.c.bf16 %v1120, %v1120
    %1123 = vrot.lane.b32.xlu0 %v999, 96
    %v1124 = vpop.permute.xlu0 %1123
    %v1126 = vsel %vm269, %v1121, 0
    %v1129 = vsel %vm299, %v1124, 0
    %1131 = vmatprep.subr.bf16.mxu0 0
    %1132 = vmatpush1.bf16.msra.mxu0 %v1129
    %1133 = vmatprep.subr.bf16.mxu0 0
    %1134 = vmatpush1.bf16.msra.mxu0 0
    %1135 = vmatprep.subr.bf16.mxu0 0
    %1136 = vmatpush1.bf16.msra.mxu0 0
    %1137 = vmatprep.subr.bf16.mxu0 0
    %1138 = vmatpush1.bf16.msra.mxu0 0
    %1139 = vmatprep.subr.bf16.mxu0 0
    %1140 = vmatpush1.bf16.msra.mxu0 0
    %1141 = vmatprep.subr.bf16.mxu0 0
    %1142 = vmatpush1.bf16.msra.mxu0 0
    %1143 = vmatprep.subr.bf16.mxu0 0
    %1144 = vmatpush1.bf16.msra.mxu0 0
    %1145 = vmatprep.subr.bf16.mxu0 0
    %1146 = vmatpush1.bf16.msra.mxu0 0
    %1147 = vmatprep.subr.bf16.mxu0 0
    %1148 = vmatpush1.bf16.msra.mxu0 0
    %1149 = vmatprep.subr.bf16.mxu0 0
    %1150 = vmatpush1.bf16.msra.mxu0 0
    %1151 = vmatprep.subr.bf16.mxu0 0
    %1152 = vmatpush1.bf16.msra.mxu0 0
    %1153 = vmatprep.subr.bf16.mxu0 0
    %1154 = vmatpush1.bf16.msra.mxu0 0
    %1155 = vmatprep.subr.bf16.mxu0 0
    %1156 = vmatpush1.bf16.msra.mxu0 0
    %1157 = vmatprep.subr.bf16.mxu0 0
    %1158 = vmatpush1.bf16.msra.mxu0 0
    %1159 = vmatprep.subr.bf16.mxu0 0
    %1160 = vmatpush1.bf16.msra.mxu0 0
    %1161 = vmatprep.subr.bf16.mxu0 0
    %1162 = vmatpush1.bf16.msra.mxu0 0
    %1163 = vmatprep.mubr.bf16.mxu0 0
    %1164 = vmatmul.mubr.bf16.gmra.mrb[0].mxu0 %v1126
    %v1165 = vpop.f32.mrb[0].mxu0
    %v1166 = vadd.f32 0.0, %v1165
    %v1167 = vpop.f32.mrb[0].mxu0
    %v1168 = vpop.f32.mrb[0].mxu0
    %v1169 = vpop.f32.mrb[0].mxu0
    %1170 = vdwg.mxu0
    %1171 = vrot.lane.b32.xlu0 %v1000, 96
    %v1172 = vpop.permute.xlu0 %1171
    %v1174 = vsel %vm269, %v1122, 0
    %v1177 = vsel %vm299, %v1172, 0
    %1179 = vmatprep.subr.bf16.mxu0 0
    %1180 = vmatpush1.bf16.msra.mxu0 %v1177
    %1181 = vmatprep.subr.bf16.mxu0 0
    %1182 = vmatpush1.bf16.msra.mxu0 0
    %1183 = vmatprep.subr.bf16.mxu0 0
    %1184 = vmatpush1.bf16.msra.mxu0 0
    %1185 = vmatprep.subr.bf16.mxu0 0
    %1186 = vmatpush1.bf16.msra.mxu0 0
    %1187 = vmatprep.subr.bf16.mxu0 0
    %1188 = vmatpush1.bf16.msra.mxu0 0
    %1189 = vmatprep.subr.bf16.mxu0 0
    %1190 = vmatpush1.bf16.msra.mxu0 0
    %1191 = vmatprep.subr.bf16.mxu0 0
    %1192 = vmatpush1.bf16.msra.mxu0 0
    %1193 = vmatprep.subr.bf16.mxu0 0
    %1194 = vmatpush1.bf16.msra.mxu0 0
    %1195 = vmatprep.subr.bf16.mxu0 0
    %1196 = vmatpush1.bf16.msra.mxu0 0
    %1197 = vmatprep.subr.bf16.mxu0 0
    %1198 = vmatpush1.bf16.msra.mxu0 0
    %1199 = vmatprep.subr.bf16.mxu0 0
    %1200 = vmatpush1.bf16.msra.mxu0 0
    %1201 = vmatprep.subr.bf16.mxu0 0
    %1202 = vmatpush1.bf16.msra.mxu0 0
    %1203 = vmatprep.subr.bf16.mxu0 0
    %1204 = vmatpush1.bf16.msra.mxu0 0
    %1205 = vmatprep.subr.bf16.mxu0 0
    %1206 = vmatpush1.bf16.msra.mxu0 0
    %1207 = vmatprep.subr.bf16.mxu0 0
    %1208 = vmatpush1.bf16.msra.mxu0 0
    %1209 = vmatprep.subr.bf16.mxu0 0
    %1210 = vmatpush1.bf16.msra.mxu0 0
    %1211 = vmatprep.mubr.bf16.mxu0 0
    %1212 = vmatmul.mubr.bf16.gmra.mrb[0].mxu0 %v1174
    %v1213 = vpop.f32.mrb[0].mxu0
    %v1214 = vadd.f32 0.0, %v1213
    %v1215 = vpop.f32.mrb[0].mxu0
    %v1216 = vpop.f32.mrb[0].mxu0
    %v1217 = vpop.f32.mrb[0].mxu0
    %1218 = vdwg.mxu0
    %1219 = vrot.lane.b32.xlu0 %v999, 80
    %v1220 = vpop.permute.xlu0 %1219
    %1221 = vrot.lane.b32.xlu0 %v999, 64
    %v1222 = vpop.permute.xlu0 %1221
    %v1224 = vsel %vm173, %v1220, 0
    %v1227 = vsel %vm173, %v1222, 0
    %1229 = vmatprep.subr.bf16.mxu0 0
    %1230 = vmatpush1.bf16.xpose.msra.mxu0 %v1227
    %1231 = vmatprep.subr.bf16.mxu0 0
    %1232 = vmatpush1.bf16.xpose.msra.mxu0 0
    %1233 = vmatprep.subr.bf16.mxu0 0
    %1234 = vmatpush1.bf16.xpose.msra.mxu0 0
    %1235 = vmatprep.subr.bf16.mxu0 0
    %1236 = vmatpush1.bf16.xpose.msra.mxu0 0
    %1237 = vmatprep.subr.bf16.mxu0 0
    %1238 = vmatpush1.bf16.xpose.msra.mxu0 0
    %1239 = vmatprep.subr.bf16.mxu0 0
    %1240 = vmatpush1.bf16.xpose.msra.mxu0 0
    %1241 = vmatprep.subr.bf16.mxu0 0
    %1242 = vmatpush1.bf16.xpose.msra.mxu0 0
    %1243 = vmatprep.subr.bf16.mxu0 0
    %1244 = vmatpush1.bf16.xpose.msra.mxu0 0
    %1245 = vmatprep.subr.bf16.mxu0 0
    %1246 = vmatpush1.bf16.xpose.msra.mxu0 0
    %1247 = vmatprep.subr.bf16.mxu0 0
    %1248 = vmatpush1.bf16.xpose.msra.mxu0 0
    %1249 = vmatprep.subr.bf16.mxu0 0
    %1250 = vmatpush1.bf16.xpose.msra.mxu0 0
    %1251 = vmatprep.subr.bf16.mxu0 0
    %1252 = vmatpush1.bf16.xpose.msra.mxu0 0
    %1253 = vmatprep.subr.bf16.mxu0 0
    %1254 = vmatpush1.bf16.xpose.msra.mxu0 0
    %1255 = vmatprep.subr.bf16.mxu0 0
    %1256 = vmatpush1.bf16.xpose.msra.mxu0 0
    %1257 = vmatprep.subr.bf16.mxu0 0
    %1258 = vmatpush1.bf16.xpose.msra.mxu0 0
    %1259 = vmatprep.subr.bf16.mxu0 0
    %1260 = vmatpush1.bf16.xpose.msra.mxu0 0
    %1261 = vmatprep.mubr.bf16.mxu0 0
    %1262 = vmatmul.mubr.bf16.gmra.mrb[0].mxu0 %v1224
    %v1263 = vpop.f32.mrb[0].mxu0
    %v1264 = vadd.f32 %v163, %v1263
    %v1265 = vpop.f32.mrb[0].mxu0
    %v1266 = vpop.f32.mrb[0].mxu0
    %v1267 = vpop.f32.mrb[0].mxu0
    %1268 = vdwg.mxu0
    %1269 = vrot.lane.b32.xlu0 %v1000, 80
    %v1270 = vpop.permute.xlu0 %1269
    %1271 = vrot.lane.b32.xlu0 %v1000, 64
    %v1272 = vpop.permute.xlu0 %1271
    %v1274 = vsel %vm173, %v1270, 0
    %v1277 = vsel %vm173, %v1272, 0
    %1279 = vmatprep.subr.bf16.mxu0 0
    %1280 = vmatpush1.bf16.xpose.msra.mxu0 %v1277
    %1281 = vmatprep.subr.bf16.mxu0 0
    %1282 = vmatpush1.bf16.xpose.msra.mxu0 0
    %1283 = vmatprep.subr.bf16.mxu0 0
    %1284 = vmatpush1.bf16.xpose.msra.mxu0 0
    %1285 = vmatprep.subr.bf16.mxu0 0
    %1286 = vmatpush1.bf16.xpose.msra.mxu0 0
    %1287 = vmatprep.subr.bf16.mxu0 0
    %1288 = vmatpush1.bf16.xpose.msra.mxu0 0
    %1289 = vmatprep.subr.bf16.mxu0 0
    %1290 = vmatpush1.bf16.xpose.msra.mxu0 0
    %1291 = vmatprep.subr.bf16.mxu0 0
    %1292 = vmatpush1.bf16.xpose.msra.mxu0 0
    %1293 = vmatprep.subr.bf16.mxu0 0
    %1294 = vmatpush1.bf16.xpose.msra.mxu0 0
    %1295 = vmatprep.subr.bf16.mxu0 0
    %1296 = vmatpush1.bf16.xpose.msra.mxu0 0
    %1297 = vmatprep.subr.bf16.mxu0 0
    %1298 = vmatpush1.bf16.xpose.msra.mxu0 0
    %1299 = vmatprep.subr.bf16.mxu0 0
    %1300 = vmatpush1.bf16.xpose.msra.mxu0 0
    %1301 = vmatprep.subr.bf16.mxu0 0
    %1302 = vmatpush1.bf16.xpose.msra.mxu0 0
    %1303 = vmatprep.subr.bf16.mxu0 0
    %1304 = vmatpush1.bf16.xpose.msra.mxu0 0
    %1305 = vmatprep.subr.bf16.mxu0 0
    %1306 = vmatpush1.bf16.xpose.msra.mxu0 0
    %1307 = vmatprep.subr.bf16.mxu0 0
    %1308 = vmatpush1.bf16.xpose.msra.mxu0 0
    %1309 = vmatprep.subr.bf16.mxu0 0
    %1310 = vmatpush1.bf16.xpose.msra.mxu0 0
    %1311 = vmatprep.mubr.bf16.mxu0 0
    %1312 = vmatmul.mubr.bf16.gmra.mrb[0].mxu0 %v1274
    %v1313 = vpop.f32.mrb[0].mxu0
    %v1314 = vadd.f32 %v167, %v1313
    %v1315 = vpop.f32.mrb[0].mxu0
    %v1316 = vpop.f32.mrb[0].mxu0
    %v1317 = vpop.f32.mrb[0].mxu0
    %1318 = vdwg.mxu0
    %v1319 = vsel %vm269, %v1264, -inf
    %1320 = vmax.xlane.f32.xlu0 %v1319
    %v1321 = vpop.xlane.xlu0 %1320
    %v1322 = vsel %vm269, %v1314, -inf
    %1323 = vmax.xlane.f32.xlu0 %v1322
    %v1324 = vpop.xlane.xlu0 %1323
    %v1325 = vsub.f32 %v1264, %v1321
    %v1326 = vsub.f32 %v1314, %v1324
    %v1327 = vmul.f32 %v1325, 1.442695
    %v1328 = vpow.pop %v1327
    %v1329 = vmul.f32 %v1326, 1.442695
    %v1330 = vpow.pop %v1329
    %v1331 = vsel %vm269, %v1328, 0.0
    %1332 = vadd.xlane.f32.xlu0 %v1331
    %v1333 = vpop.xlane.xlu0 %1332
    %v1334 = vsel %vm269, %v1330, 0.0
    %1335 = vadd.xlane.f32.xlu0 %v1334
    %v1336 = vpop.xlane.xlu0 %1335
    %v1337 = vrcp.pop %v1333
    %v1338 = vrcp.pop %v1336
    %v1339 = vmul.f32 %v1328, %v1337
    %v1340 = vmul.f32 %v1330, %v1338
    %v1341 = vpack.c.bf16 %v1339, %v1339
    %v1342 = vpack.c.bf16 %v1340, %v1340
    %1343 = vrot.lane.b32.xlu0 %v999, 48
    %v1344 = vpop.permute.xlu0 %1343
    %v1346 = vsel %vm269, %v1341, 0
    %v1349 = vsel %vm299, %v1344, 0
    %1351 = vmatprep.subr.bf16.mxu0 0
    %1352 = vmatpush1.bf16.msra.mxu0 %v1349
    %1353 = vmatprep.subr.bf16.mxu0 0
    %1354 = vmatpush1.bf16.msra.mxu0 0
    %1355 = vmatprep.subr.bf16.mxu0 0
    %1356 = vmatpush1.bf16.msra.mxu0 0
    %1357 = vmatprep.subr.bf16.mxu0 0
    %1358 = vmatpush1.bf16.msra.mxu0 0
    %1359 = vmatprep.subr.bf16.mxu0 0
    %1360 = vmatpush1.bf16.msra.mxu0 0
    %1361 = vmatprep.subr.bf16.mxu0 0
    %1362 = vmatpush1.bf16.msra.mxu0 0
    %1363 = vmatprep.subr.bf16.mxu0 0
    %1364 = vmatpush1.bf16.msra.mxu0 0
    %1365 = vmatprep.subr.bf16.mxu0 0
    %1366 = vmatpush1.bf16.msra.mxu0 0
    %1367 = vmatprep.subr.bf16.mxu0 0
    %1368 = vmatpush1.bf16.msra.mxu0 0
    %1369 = vmatprep.subr.bf16.mxu0 0
    %1370 = vmatpush1.bf16.msra.mxu0 0
    %1371 = vmatprep.subr.bf16.mxu0 0
    %1372 = vmatpush1.bf16.msra.mxu0 0
    %1373 = vmatprep.subr.bf16.mxu0 0
    %1374 = vmatpush1.bf16.msra.mxu0 0
    %1375 = vmatprep.subr.bf16.mxu0 0
    %1376 = vmatpush1.bf16.msra.mxu0 0
    %1377 = vmatprep.subr.bf16.mxu0 0
    %1378 = vmatpush1.bf16.msra.mxu0 0
    %1379 = vmatprep.subr.bf16.mxu0 0
    %1380 = vmatpush1.bf16.msra.mxu0 0
    %1381 = vmatprep.subr.bf16.mxu0 0
    %1382 = vmatpush1.bf16.msra.mxu0 0
    %1383 = vmatprep.mubr.bf16.mxu0 0
    %1384 = vmatmul.mubr.bf16.gmra.mrb[0].mxu0 %v1346
    %v1385 = vpop.f32.mrb[0].mxu0
    %v1386 = vadd.f32 0.0, %v1385
    %v1387 = vpop.f32.mrb[0].mxu0
    %v1388 = vpop.f32.mrb[0].mxu0
    %v1389 = vpop.f32.mrb[0].mxu0
    %1390 = vdwg.mxu0
    %1391 = vrot.lane.b32.xlu0 %v1000, 48
    %v1392 = vpop.permute.xlu0 %1391
    %v1394 = vsel %vm269, %v1342, 0
    %v1397 = vsel %vm299, %v1392, 0
    %1399 = vmatprep.subr.bf16.mxu0 0
    %1400 = vmatpush1.bf16.msra.mxu0 %v1397
    %1401 = vmatprep.subr.bf16.mxu0 0
    %1402 = vmatpush1.bf16.msra.mxu0 0
    %1403 = vmatprep.subr.bf16.mxu0 0
    %1404 = vmatpush1.bf16.msra.mxu0 0
    %1405 = vmatprep.subr.bf16.mxu0 0
    %1406 = vmatpush1.bf16.msra.mxu0 0
    %1407 = vmatprep.subr.bf16.mxu0 0
    %1408 = vmatpush1.bf16.msra.mxu0 0
    %1409 = vmatprep.subr.bf16.mxu0 0
    %1410 = vmatpush1.bf16.msra.mxu0 0
    %1411 = vmatprep.subr.bf16.mxu0 0
    %1412 = vmatpush1.bf16.msra.mxu0 0
    %1413 = vmatprep.subr.bf16.mxu0 0
    %1414 = vmatpush1.bf16.msra.mxu0 0
    %1415 = vmatprep.subr.bf16.mxu0 0
    %1416 = vmatpush1.bf16.msra.mxu0 0
    %1417 = vmatprep.subr.bf16.mxu0 0
    %1418 = vmatpush1.bf16.msra.mxu0 0
    %1419 = vmatprep.subr.bf16.mxu0 0
    %1420 = vmatpush1.bf16.msra.mxu0 0
    %1421 = vmatprep.subr.bf16.mxu0 0
    %1422 = vmatpush1.bf16.msra.mxu0 0
    %1423 = vmatprep.subr.bf16.mxu0 0
    %1424 = vmatpush1.bf16.msra.mxu0 0
    %1425 = vmatprep.subr.bf16.mxu0 0
    %1426 = vmatpush1.bf16.msra.mxu0 0
    %1427 = vmatprep.subr.bf16.mxu0 0
    %1428 = vmatpush1.bf16.msra.mxu0 0
    %1429 = vmatprep.subr.bf16.mxu0 0
    %1430 = vmatpush1.bf16.msra.mxu0 0
    %1431 = vmatprep.mubr.bf16.mxu0 0
    %1432 = vmatmul.mubr.bf16.gmra.mrb[0].mxu0 %v1394
    %v1433 = vpop.f32.mrb[0].mxu0
    %v1434 = vadd.f32 0.0, %v1433
    %v1435 = vpop.f32.mrb[0].mxu0
    %v1436 = vpop.f32.mrb[0].mxu0
    %v1437 = vpop.f32.mrb[0].mxu0
    %1438 = vdwg.mxu0
    %1441 = vrot.lane.b32.xlu0 %v1386, 16
    %v1442 = vpop.permute.xlu0 %1441
    %1443 = vrot.lane.b32.xlu0 %v1434, 16
    %v1444 = vpop.permute.xlu0 %1443
    %v1447 = vsel %vm173, %v1166, %v1442
    %v1448 = vsel %vm173, %v1214, %v1444
    %v1449 = vpack.c.bf16 %v1448, %v1447
    %s1450 = scalar_lea.vmem %s5, 16
    %v1451 = vld [vmem:[%s1450] sm:$0xf]
    %v1452 = vld [vmem:[%s1450 + $0x4] sm:$0xf]
    %v1453 = vld [vmem:[%s1450 + $0x8] sm:$0xf]
    %v1454 = vld [vmem:[%s1450 + $0xc] sm:$0xf]
    %v1455 = vlaneseq
    %v1456 = vshrl.u32 %v1455, 7
    %v1457 = vsub.s32 1, %v1456
    %v1458 = vrot.slane %v932, %v1457
    %v1463 = vunpack.c.l.b16 %v1451
    %v1464 = vunpack.c.l.b16 %v1452
    %v1465 = vunpack.c.l.b16 %v1453
    %v1466 = vunpack.c.l.b16 %v1454
    %v1467 = vpack.c.b16 %v1464, %v1463
    %v1468 = vpack.c.b16 %v1466, %v1465
    %v1472 = vsel %vm48, %v1449, 0
    %1474 = vmatprep.subr.bf16.mxu0 0
    %1475 = vmatpush1.bf16.msra.mxu0 %v1467
    %1476 = vmatprep.subr.bf16.mxu0 0
    %1477 = vmatpush1.bf16.msra.mxu0 %v1468
    %1478 = vmatprep.subr.bf16.mxu0 0
    %1479 = vmatpush1.bf16.msra.mxu0 0
    %1480 = vmatprep.subr.bf16.mxu0 0
    %1481 = vmatpush1.bf16.msra.mxu0 0
    %1482 = vmatprep.subr.bf16.mxu0 0
    %1483 = vmatpush1.bf16.msra.mxu0 0
    %1484 = vmatprep.subr.bf16.mxu0 0
    %1485 = vmatpush1.bf16.msra.mxu0 0
    %1486 = vmatprep.subr.bf16.mxu0 0
    %1487 = vmatpush1.bf16.msra.mxu0 0
    %1488 = vmatprep.subr.bf16.mxu0 0
    %1489 = vmatpush1.bf16.msra.mxu0 0
    %1490 = vmatprep.subr.bf16.mxu0 0
    %1491 = vmatpush1.bf16.msra.mxu0 0
    %1492 = vmatprep.subr.bf16.mxu0 0
    %1493 = vmatpush1.bf16.msra.mxu0 0
    %1494 = vmatprep.subr.bf16.mxu0 0
    %1495 = vmatpush1.bf16.msra.mxu0 0
    %1496 = vmatprep.subr.bf16.mxu0 0
    %1497 = vmatpush1.bf16.msra.mxu0 0
    %1498 = vmatprep.subr.bf16.mxu0 0
    %1499 = vmatpush1.bf16.msra.mxu0 0
    %1500 = vmatprep.subr.bf16.mxu0 0
    %1501 = vmatpush1.bf16.msra.mxu0 0
    %1502 = vmatprep.subr.bf16.mxu0 0
    %1503 = vmatpush1.bf16.msra.mxu0 0
    %1504 = vmatprep.subr.bf16.mxu0 0
    %1505 = vmatpush1.bf16.msra.mxu0 0
    %1506 = vmatprep.mubr.bf16.mxu0 0
    %1507 = vmatmul.mubr.bf16.gmra.mrb[0].mxu0 %v1472
    %v1508 = vpop.f32.mrb[0].mxu0
    %v1509 = vadd.f32 %v1458, %v1508
    %v1510 = vpop.f32.mrb[0].mxu0
    %v1511 = vpop.f32.mrb[0].mxu0
    %v1512 = vadd.f32 %v1458, %v1511
    %v1513 = vpop.f32.mrb[0].mxu0
    %1514 = vdwg.mxu0
    %v1515 = vadd.f32 %v929, %v1509
    %v1516 = vadd.f32 %v930, %v1512
    %v1517 = vsel %vm48, %v1515, 0.0
    %1518 = vadd.xlane.f32.xlu0 %v1517
    %v1519 = vpop.xlane.xlu0 %1518
    %v1520 = vsel %vm48, %v1516, 0.0
    %1521 = vadd.xlane.f32.xlu0 %v1520
    %v1522 = vpop.xlane.xlu0 %1521
    %v1523 = vmul.f32 %v1519, %v55
    %v1524 = vmul.f32 %v1522, %v55
    %v1525 = vsub.f32 %v1515, %v1523
    %v1526 = vsub.f32 %v1516, %v1524
    %v1527 = vmul.f32 %v1525, %v1525
    %v1528 = vmul.f32 %v1526, %v1526
    %v1529 = vsel %vm48, %v1527, 0.0
    %1530 = vadd.xlane.f32.xlu0 %v1529
    %v1531 = vpop.xlane.xlu0 %1530
    %v1532 = vsel %vm48, %v1528, 0.0
    %1533 = vadd.xlane.f32.xlu0 %v1532
    %v1534 = vpop.xlane.xlu0 %1533
    %v1535 = vmul.f32 %v1531, %v55
    %v1536 = vmul.f32 %v1534, %v55
    %v1537 = vadd.f32 %v1535, 1e-12
    %v1538 = vadd.f32 %v1536, 1e-12
    %v1539 = vrsqrt.pop %v1537
    %v1540 = vrsqrt.pop %v1538
    %v1541 = vmul.f32 %v1525, %v1539
    %v1542 = vmul.f32 %v1526, %v1540
    %v1543 = vlaneseq
    %v1544 = vshrl.u32 %v1543, 7
    %v1545 = vsub.s32 2, %v1544
    %v1546 = vrot.slane %v932, %v1545
    %v1547 = vmul.f32 %v1541, %v1546
    %v1548 = vmul.f32 %v1542, %v1546
    %v1549 = vlaneseq
    %v1550 = vshrl.u32 %v1549, 7
    %v1551 = vsub.s32 3, %v1550
    %v1552 = vrot.slane %v932, %v1551
    %v1553 = vadd.f32 %v1547, %v1552
    %v1554 = vadd.f32 %v1548, %v1552
    %v1555 = vpack.c.bf16 %v1554, %v1553
    %s1556 = scalar_lea.vmem %s6, 16
    %v1557 = vld [vmem:[%s1556] sm:$0xf]
    %v1558 = vld [vmem:[%s1556 + $0x4] sm:$0xf]
    %v1559 = vld [vmem:[%s1556 + $0x8] sm:$0xf]
    %v1560 = vld [vmem:[%s1556 + $0xc] sm:$0xf]
    %v1561 = vlaneseq
    %v1562 = vshrl.u32 %v1561, 7
    %v1563 = vsub.s32 4, %v1562
    %v1564 = vrot.slane %v932, %v1563
    %v1569 = vunpack.c.l.b16 %v1557
    %v1570 = vunpack.c.l.b16 %v1558
    %v1571 = vunpack.c.l.b16 %v1559
    %v1572 = vunpack.c.l.b16 %v1560
    %v1573 = vpack.c.b16 %v1570, %v1569
    %v1574 = vpack.c.b16 %v1572, %v1571
    %v1578 = vsel %vm48, %v1555, 0
    %1580 = vmatprep.subr.bf16.mxu0 0
    %1581 = vmatpush1.bf16.msra.mxu0 %v1573
    %1582 = vmatprep.subr.bf16.mxu0 0
    %1583 = vmatpush1.bf16.msra.mxu0 %v1574
    %1584 = vmatprep.subr.bf16.mxu0 0
    %1585 = vmatpush1.bf16.msra.mxu0 0
    %1586 = vmatprep.subr.bf16.mxu0 0
    %1587 = vmatpush1.bf16.msra.mxu0 0
    %1588 = vmatprep.subr.bf16.mxu0 0
    %1589 = vmatpush1.bf16.msra.mxu0 0
    %1590 = vmatprep.subr.bf16.mxu0 0
    %1591 = vmatpush1.bf16.msra.mxu0 0
    %1592 = vmatprep.subr.bf16.mxu0 0
    %1593 = vmatpush1.bf16.msra.mxu0 0
    %1594 = vmatprep.subr.bf16.mxu0 0
    %1595 = vmatpush1.bf16.msra.mxu0 0
    %1596 = vmatprep.subr.bf16.mxu0 0
    %1597 = vmatpush1.bf16.msra.mxu0 0
    %1598 = vmatprep.subr.bf16.mxu0 0
    %1599 = vmatpush1.bf16.msra.mxu0 0
    %1600 = vmatprep.subr.bf16.mxu0 0
    %1601 = vmatpush1.bf16.msra.mxu0 0
    %1602 = vmatprep.subr.bf16.mxu0 0
    %1603 = vmatpush1.bf16.msra.mxu0 0
    %1604 = vmatprep.subr.bf16.mxu0 0
    %1605 = vmatpush1.bf16.msra.mxu0 0
    %1606 = vmatprep.subr.bf16.mxu0 0
    %1607 = vmatpush1.bf16.msra.mxu0 0
    %1608 = vmatprep.subr.bf16.mxu0 0
    %1609 = vmatpush1.bf16.msra.mxu0 0
    %1610 = vmatprep.subr.bf16.mxu0 0
    %1611 = vmatpush1.bf16.msra.mxu0 0
    %1612 = vmatprep.mubr.bf16.mxu0 0
    %1613 = vmatmul.mubr.bf16.gmra.mrb[0].mxu0 %v1578
    %v1614 = vpop.f32.mrb[0].mxu0
    %v1615 = vadd.f32 %v1564, %v1614
    %v1616 = vpop.f32.mrb[0].mxu0
    %v1617 = vpop.f32.mrb[0].mxu0
    %v1618 = vadd.f32 %v1564, %v1617
    %v1619 = vpop.f32.mrb[0].mxu0
    %1620 = vdwg.mxu0
    %v1621 = vmul.f32 %v1615, 0.5
    %v1622 = vmul.f32 %v1618, 0.5
    %v1623 = vmul.f32 %v1615, 0.044715
    %v1624 = vmul.f32 %v1618, 0.044715
    %v1625 = vmul.f32 %v1623, %v1615
    %v1626 = vmul.f32 %v1624, %v1618
    %v1627 = vmul.f32 %v1625, %v1615
    %v1628 = vmul.f32 %v1626, %v1618
    %v1629 = vadd.f32 %v1615, %v1627
    %v1630 = vadd.f32 %v1618, %v1628
    %v1631 = vmul.f32 %v1629, 0.7978846
    %v1632 = vmul.f32 %v1630, 0.7978846
    %v1633 = vtanh.pop %v1631
    %v1634 = vtanh.pop %v1632
    %v1635 = vadd.f32 %v1633, 1.0
    %v1636 = vadd.f32 %v1634, 1.0
    %v1637 = vmul.f32 %v1621, %v1635
    %v1638 = vmul.f32 %v1622, %v1636
    %v1639 = vpack.c.bf16 %v1638, %v1637
    %s1640 = scalar_lea.vmem %s7, 32
    %v1641 = vld [vmem:[%s1640] sm:$0xf]
    %v1642 = vld [vmem:[%s1640 + $0x4] sm:$0xf]
    %v1643 = vld [vmem:[%s1640 + $0x8] sm:$0xf]
    %v1644 = vld [vmem:[%s1640 + $0xc] sm:$0xf]
    %v1645 = vld [vmem:[%s1640 + $0x10] sm:$0xf]
    %v1646 = vld [vmem:[%s1640 + $0x14] sm:$0xf]
    %v1647 = vld [vmem:[%s1640 + $0x18] sm:$0xf]
    %v1648 = vld [vmem:[%s1640 + $0x1c] sm:$0xf]
    %v1649 = vlaneseq
    %v1650 = vshrl.u32 %v1649, 7
    %v1651 = vsub.s32 5, %v1650
    %v1652 = vrot.slane %v932, %v1651
    %v1661 = vunpack.c.l.b16 %v1641
    %v1662 = vunpack.c.l.b16 %v1642
    %v1663 = vunpack.c.l.b16 %v1643
    %v1664 = vunpack.c.l.b16 %v1644
    %v1665 = vunpack.c.l.b16 %v1645
    %v1666 = vunpack.c.l.b16 %v1646
    %v1667 = vunpack.c.l.b16 %v1647
    %v1668 = vunpack.c.l.b16 %v1648
    %v1669 = vpack.c.b16 %v1662, %v1661
    %v1670 = vpack.c.b16 %v1664, %v1663
    %v1671 = vpack.c.b16 %v1666, %v1665
    %v1672 = vpack.c.b16 %v1668, %v1667
    %v1678 = vsel %vm846, %v1639, 0
    %1680 = vmatprep.subr.bf16.mxu0 0
    %1681 = vmatpush1.bf16.msra.mxu0 %v1669
    %1682 = vmatprep.subr.bf16.mxu0 0
    %1683 = vmatpush1.bf16.msra.mxu0 %v1670
    %1684 = vmatprep.subr.bf16.mxu0 0
    %1685 = vmatpush1.bf16.msra.mxu0 %v1671
    %1686 = vmatprep.subr.bf16.mxu0 0
    %1687 = vmatpush1.bf16.msra.mxu0 %v1672
    %1688 = vmatprep.subr.bf16.mxu0 0
    %1689 = vmatpush1.bf16.msra.mxu0 0
    %1690 = vmatprep.subr.bf16.mxu0 0
    %1691 = vmatpush1.bf16.msra.mxu0 0
    %1692 = vmatprep.subr.bf16.mxu0 0
    %1693 = vmatpush1.bf16.msra.mxu0 0
    %1694 = vmatprep.subr.bf16.mxu0 0
    %1695 = vmatpush1.bf16.msra.mxu0 0
    %1696 = vmatprep.subr.bf16.mxu0 0
    %1697 = vmatpush1.bf16.msra.mxu0 0
    %1698 = vmatprep.subr.bf16.mxu0 0
    %1699 = vmatpush1.bf16.msra.mxu0 0
    %1700 = vmatprep.subr.bf16.mxu0 0
    %1701 = vmatpush1.bf16.msra.mxu0 0
    %1702 = vmatprep.subr.bf16.mxu0 0
    %1703 = vmatpush1.bf16.msra.mxu0 0
    %1704 = vmatprep.subr.bf16.mxu0 0
    %1705 = vmatpush1.bf16.msra.mxu0 0
    %1706 = vmatprep.subr.bf16.mxu0 0
    %1707 = vmatpush1.bf16.msra.mxu0 0
    %1708 = vmatprep.subr.bf16.mxu0 0
    %1709 = vmatpush1.bf16.msra.mxu0 0
    %1710 = vmatprep.subr.bf16.mxu0 0
    %1711 = vmatpush1.bf16.msra.mxu0 0
    %1712 = vmatprep.mubr.bf16.mxu0 0
    %1713 = vmatmul.mubr.bf16.gmra.mrb[0].mxu0 %v1678
    %v1714 = vpop.f32.mrb[0].mxu0
    %v1715 = vadd.f32 %v1652, %v1714
    %v1716 = vpop.f32.mrb[0].mxu0
    %v1717 = vpop.f32.mrb[0].mxu0
    %v1718 = vadd.f32 %v1652, %v1717
    %v1719 = vpop.f32.mrb[0].mxu0
    %1720 = vdwg.mxu0
    %v1721 = vadd.f32 %v1553, %v1715
    %v1722 = vadd.f32 %v1554, %v1718
    %v1723 = vsel %vm48, %v1721, 0.0
    %1724 = vadd.xlane.f32.xlu0 %v1723
    %v1725 = vpop.xlane.xlu0 %1724
    %v1726 = vsel %vm48, %v1722, 0.0
    %1727 = vadd.xlane.f32.xlu0 %v1726
    %v1728 = vpop.xlane.xlu0 %1727
    %v1729 = vmul.f32 %v1725, %v55
    %v1730 = vmul.f32 %v1728, %v55
    %v1731 = vsub.f32 %v1721, %v1729
    %v1732 = vsub.f32 %v1722, %v1730
    %v1733 = vmul.f32 %v1731, %v1731
    %v1734 = vmul.f32 %v1732, %v1732
    %v1735 = vsel %vm48, %v1733, 0.0
    %1736 = vadd.xlane.f32.xlu0 %v1735
    %v1737 = vpop.xlane.xlu0 %1736
    %v1738 = vsel %vm48, %v1734, 0.0
    %1739 = vadd.xlane.f32.xlu0 %v1738
    %v1740 = vpop.xlane.xlu0 %1739
    %v1741 = vmul.f32 %v1737, %v55
    %v1742 = vmul.f32 %v1740, %v55
    %v1743 = vadd.f32 %v1741, 1e-12
    %v1744 = vadd.f32 %v1742, 1e-12
    %v1745 = vrsqrt.pop %v1743
    %v1746 = vrsqrt.pop %v1744
    %v1747 = vmul.f32 %v1731, %v1745
    %v1748 = vmul.f32 %v1732, %v1746
    %v1749 = vlaneseq
    %v1750 = vshrl.u32 %v1749, 7
    %v1751 = vsub.s32 6, %v1750
    %v1752 = vrot.slane %v932, %v1751
    %v1753 = vmul.f32 %v1747, %v1752
    %v1754 = vmul.f32 %v1748, %v1752
    %v1755 = vlaneseq
    %v1756 = vshrl.u32 %v1755, 7
    %v1757 = vsub.s32 7, %v1756
    %v1758 = vrot.slane %v932, %v1757
    %v1759 = vadd.f32 %v1753, %v1758
    %v1760 = vadd.f32 %v1754, %v1758
    %1761 = vst.msk [vmem:[#allocation2] sm:$0xff] %vm48, %v1759
    %1762 = vst.msk [vmem:[#allocation2 + $0x8] sm:$0xff] %vm48, %v1760
    %s1763 = sld [smem:[#allocation4]]
    %s1764 = scalar_lea.vmem [#allocation2], %s1763
    %v1765 = vld [vmem:[%s1764] sm:$0x1]
    %s1766 = sld [smem:[#allocation4 + $0x80]]
    %s1767 = sadd.s32 %s1766, 8
    %s1768 = scalar_lea.vmem [#allocation2], %s1767
    %v1769 = vld [vmem:[%s1768] sm:$0x1]
    %s1770 = sld [smem:[#allocation4 + $0x1]]
    %s1771 = scalar_lea.vmem [#allocation2], %s1770
    %v1772 = vld [vmem:[%s1771] sm:$0x1]
    %s1773 = sld [smem:[#allocation4 + $0x81]]
    %s1774 = sadd.s32 %s1773, 8
    %s1775 = scalar_lea.vmem [#allocation2], %s1774
    %v1776 = vld [vmem:[%s1775] sm:$0x1]
    %v1778 = vrot.slane %v1769, 7
    %vm1780 = vcmask 1040384
    %v1781 = vsel %vm1780, %v1765, %v1778
    %v1783 = vrot.slane %v1776, 7
    %v1785 = vsel %vm1780, %v1772, %v1783
    %v1786 = vpack.c.bf16 %v1781, %v1781
    %v1787 = vld [vmem:[%s9] sm:$0xf]
    %v1788 = vld [vmem:[%s9 + $0x4] sm:$0xf]
    %v1789 = vld [vmem:[%s9 + $0x8] sm:$0xf]
    %v1790 = vld [vmem:[%s9 + $0xc] sm:$0xf]
    %v1791 = vpack.c.bf16 %v1785, %v1785
    %v1792 = vld [vmem:[%s9 + $0x10] sm:$0xf]
    %v1793 = vld [vmem:[%s9 + $0x14] sm:$0xf]
    %v1794 = vld [vmem:[%s9 + $0x18] sm:$0xf]
    %v1795 = vld [vmem:[%s9 + $0x1c] sm:$0xf]
    %v1800 = vunpack.c.l.b16 %v1792
    %v1801 = vunpack.c.l.b16 %v1793
    %v1802 = vunpack.c.l.b16 %v1794
    %v1803 = vunpack.c.l.b16 %v1795
    %v1804 = vpack.c.b16 %v1801, %v1800
    %v1805 = vpack.c.b16 %v1803, %v1802
    %v1809 = vsel %vm48, %v1791, 0
    %1811 = vmatprep.subr.bf16.mxu0 0
    %1812 = vmatpush1.bf16.msra.mxu0 %v1804
    %1813 = vmatprep.subr.bf16.mxu0 0
    %1814 = vmatpush1.bf16.msra.mxu0 %v1805
    %1815 = vmatprep.subr.bf16.mxu0 0
    %1816 = vmatpush1.bf16.msra.mxu0 0
    %1817 = vmatprep.subr.bf16.mxu0 0
    %1818 = vmatpush1.bf16.msra.mxu0 0
    %1819 = vmatprep.subr.bf16.mxu0 0
    %1820 = vmatpush1.bf16.msra.mxu0 0
    %1821 = vmatprep.subr.bf16.mxu0 0
    %1822 = vmatpush1.bf16.msra.mxu0 0
    %1823 = vmatprep.subr.bf16.mxu0 0
    %1824 = vmatpush1.bf16.msra.mxu0 0
    %1825 = vmatprep.subr.bf16.mxu0 0
    %1826 = vmatpush1.bf16.msra.mxu0 0
    %1827 = vmatprep.subr.bf16.mxu0 0
    %1828 = vmatpush1.bf16.msra.mxu0 0
    %1829 = vmatprep.subr.bf16.mxu0 0
    %1830 = vmatpush1.bf16.msra.mxu0 0
    %1831 = vmatprep.subr.bf16.mxu0 0
    %1832 = vmatpush1.bf16.msra.mxu0 0
    %1833 = vmatprep.subr.bf16.mxu0 0
    %1834 = vmatpush1.bf16.msra.mxu0 0
    %1835 = vmatprep.subr.bf16.mxu0 0
    %1836 = vmatpush1.bf16.msra.mxu0 0
    %1837 = vmatprep.subr.bf16.mxu0 0
    %1838 = vmatpush1.bf16.msra.mxu0 0
    %1839 = vmatprep.subr.bf16.mxu0 0
    %1840 = vmatpush1.bf16.msra.mxu0 0
    %1841 = vmatprep.subr.bf16.mxu0 0
    %1842 = vmatpush1.bf16.msra.mxu0 0
    %1843 = vmatprep.mubr.bf16.mxu0 0
    %1844 = vmatmul.mubr.bf16.gmra.mrb[0].mxu0 %v1809
    %v1845 = vpop.f32.mrb[0].mxu0
    %v1846 = vadd.f32 0.0, %v1845
    %v1847 = vpop.f32.mrb[0].mxu0
    %v1848 = vpop.f32.mrb[0].mxu0
    %v1849 = vpop.f32.mrb[0].mxu0
    %1850 = vdwg.mxu0
    %v1855 = vunpack.c.l.b16 %v1787
    %v1856 = vunpack.c.l.b16 %v1788
    %v1857 = vunpack.c.l.b16 %v1789
    %v1858 = vunpack.c.l.b16 %v1790
    %v1859 = vpack.c.b16 %v1856, %v1855
    %v1860 = vpack.c.b16 %v1858, %v1857
    %v1864 = vsel %vm48, %v1786, 0
    %1866 = vmatprep.subr.bf16.mxu0 0
    %1867 = vmatpush1.bf16.msra.mxu0 %v1859
    %1868 = vmatprep.subr.bf16.mxu0 0
    %1869 = vmatpush1.bf16.msra.mxu0 %v1860
    %1870 = vmatprep.subr.bf16.mxu0 0
    %1871 = vmatpush1.bf16.msra.mxu0 0
    %1872 = vmatprep.subr.bf16.mxu0 0
    %1873 = vmatpush1.bf16.msra.mxu0 0
    %1874 = vmatprep.subr.bf16.mxu0 0
    %1875 = vmatpush1.bf16.msra.mxu0 0
    %1876 = vmatprep.subr.bf16.mxu0 0
    %1877 = vmatpush1.bf16.msra.mxu0 0
    %1878 = vmatprep.subr.bf16.mxu0 0
    %1879 = vmatpush1.bf16.msra.mxu0 0
    %1880 = vmatprep.subr.bf16.mxu0 0
    %1881 = vmatpush1.bf16.msra.mxu0 0
    %1882 = vmatprep.subr.bf16.mxu0 0
    %1883 = vmatpush1.bf16.msra.mxu0 0
    %1884 = vmatprep.subr.bf16.mxu0 0
    %1885 = vmatpush1.bf16.msra.mxu0 0
    %1886 = vmatprep.subr.bf16.mxu0 0
    %1887 = vmatpush1.bf16.msra.mxu0 0
    %1888 = vmatprep.subr.bf16.mxu0 0
    %1889 = vmatpush1.bf16.msra.mxu0 0
    %1890 = vmatprep.subr.bf16.mxu0 0
    %1891 = vmatpush1.bf16.msra.mxu0 0
    %1892 = vmatprep.subr.bf16.mxu0 0
    %1893 = vmatpush1.bf16.msra.mxu0 0
    %1894 = vmatprep.subr.bf16.mxu0 0
    %1895 = vmatpush1.bf16.msra.mxu0 0
    %1896 = vmatprep.subr.bf16.mxu0 0
    %1897 = vmatpush1.bf16.msra.mxu0 0
    %1898 = vmatprep.mubr.bf16.mxu0 0
    %1899 = vmatmul.mubr.bf16.gmra.mrb[0].mxu0 %v1864
    %v1900 = vpop.f32.mrb[0].mxu0
    %v1901 = vadd.f32 %v1846, %v1900
    %v1902 = vpop.f32.mrb[0].mxu0
    %v1903 = vpop.f32.mrb[0].mxu0
    %v1904 = vpop.f32.mrb[0].mxu0
    %1905 = vdwg.mxu0
    %v1906 = vld [vmem:[%s10] sm:$0x1]
    %v1908 = vlaneseq
    %v1909 = vshrl.u32 %v1908, 7
    %v1910 = vsub.s32 0, %v1909
    %v1911 = vrot.slane %v1906, %v1910
    %v1913 = vadd.f32 %v1901, %v1911
    %vm1914 = vcmask 254976
    %1915 = vst.msk [vmem:[#allocation5] sm:$0x3] %vm1914, %v1913
    // Predicated region
    $region42: #{bert_encoder_forward.1} parent=1 // pred_check
      _
    $region43: #{bert_encoder_forward.1} parent=1 // pred_check_branch
      %1917 = sbr.rel (0) target = $region45
    $region44: #{bert_encoder_forward.1} parent=1 // pred_region
      %s1919 = ssub.s32 32, 32
      %1920 = vsyncadd [#allocation6], %s1919
      %s1922 = sshll.u32 [#allocation5], 4
      %s1923 = int_to_ptr.vmem [resolvable:$true] %s1922
      %1925 = dma.vmem_to_hbm [thread:$0]  %s1923, 32, %s11, [#allocation6]
    $region45: #{bert_encoder_forward.1} parent=1 // pred_fallthru
      _
    // Predicated region
    $region46: #{bert_encoder_forward.1} parent=1 // pred_check
      _
    $region47: #{bert_encoder_forward.1} parent=1 // pred_check_branch
      %1927 = sbr.rel (0) target = $region49
    $region48: #{bert_encoder_forward.1} parent=1 // pred_region
      %1928 = dma.done [#allocation6], 32
    $region49: #{bert_encoder_forward.1} parent=1 // pred_fallthru
      _
    %1929 = vsyncpa [#allocation6], 1

</llo_original>
